<compile_context>
chip_gen: v7x
topology: tpu7x:2x2x1
jax: 0.10.0
libtpu: 0.0.40
codegen_flags: <defaults>
</compile_context>

<pallas_src>
import functools

import jax
import jax.numpy as jnp
from jax import lax
from jax.experimental import pallas as pl
from jax.experimental.pallas import tpu as pltpu


def _round_up(x, m):
    return ((x + m - 1) // m) * m


def _choose_sub(tile_b):
    """Largest sub-slice width (multiple of 128, <= 512) that divides tile_b."""
    if tile_b <= 512:
        return tile_b
    for cand in (512, 384, 256, 128):
        if tile_b % cand == 0:
            return cand
    return tile_b  # unreachable for tile_b that is a multiple of 128


def _mlp_kernel(num_hidden, sub, num_sub, *refs):
    """refs = (x, w1, b1, [ws, bs,] w_head, b_head, out).

    x:       (1, TILE_B)              batch tile, lane-dense (batch on lanes)
    w1, b1:  (W, 1)                   first layer Linear(1 -> W)
    ws, bs:  (L-1, W, W), (L-1, W, 1) stacked hidden layers (only if present)
    w_head:  (W, 1)  (pre-transposed), b_head: (1, 1)
    out:     (1, TILE_B)
    """
    x_ref, w1_ref, b1_ref = refs[0], refs[1], refs[2]
    wh_ref, bh_ref, out_ref = refs[-3], refs[-2], refs[-1]

    # Weights are tiny; load once per grid step, reuse across all sub-slices.
    w1 = w1_ref[...]                      # (W, 1)
    b1 = b1_ref[...]                      # (W, 1)
    hidden = []
    if num_hidden > 0:
        ws_ref, bs_ref = refs[3], refs[4]
        hidden = [(ws_ref[i], bs_ref[i]) for i in range(num_hidden)]
    wh = wh_ref[...]                      # (W, 1)
    bh = bh_ref[...]                      # (1, 1)

    def compute(start):
        x = x_ref[:, pl.ds(start, sub)]                     # (1, sub)
        # Layer 1: Linear(1 -> W) + ReLU as a VPU broadcast FMA (outer product)
        # instead of a K=1 MXU matmul.
        h = jnp.maximum(w1 * x + b1, 0.0)                   # (W, sub)
        # Hidden layers: H <- relu(W_i @ H + b_i); batch on the lane axis.
        for w, b in hidden:
            h = jnp.maximum(
                jnp.dot(w, h,
                        preferred_element_type=jnp.float32,
                        precision=lax.Precision.HIGHEST) + b,
                0.0,
            )
        # Head Linear(W -> 1): VPU multiply + sublane (XLU) reduce; skips the
        # MXU push / result-FIFO pop an M=1 matmul would pay.
        out_ref[:, pl.ds(start, sub)] = (
            jnp.sum(wh * h, axis=0, keepdims=True) + bh)

    if num_sub == 1:
        compute(0)
    else:
        # Keep (W, sub) activations register-resident between layers while the
        # outer BlockSpec tile stays large for DMA / step-overhead amortization.
        @pl.loop(0, num_sub)
        def _(s):
            compute(pl.multiple_of(s * sub, sub))


def prepare_params(weights, biases):
    """One-time weight preprocessing (hoisted out of the per-call path).

    weights / biases in PyTorch nn.Linear layout (weight = (out, in)):
      weights[0]:  (W, 1), biases[0]:  (W,)   -- Linear(1 -> W)
      weights[i]:  (W, W), biases[i]:  (W,)   -- Linear(W -> W)
      weights[-1]: (1, W), biases[-1]: (1,)   -- head Linear(W -> 1)
    """
    assert len(weights) == len(biases) and len(weights) >= 2
    num_hidden = len(weights) - 2
    w1 = jnp.asarray(weights[0], jnp.float32)                      # (W, 1)
    b1 = jnp.asarray(biases[0], jnp.float32).reshape(-1, 1)        # (W, 1)
    wh = jnp.asarray(weights[-1], jnp.float32).reshape(-1, 1)      # (W, 1)
    bh = jnp.asarray(biases[-1], jnp.float32).reshape(1, 1)        # (1, 1)
    if num_hidden > 0:
        ws = jnp.stack([jnp.asarray(w, jnp.float32) for w in weights[1:-1]])
        bs = jnp.stack([jnp.asarray(b, jnp.float32).reshape(-1, 1)
                        for b in biases[1:-1]])
    else:
        ws = bs = None
    return dict(w1=w1, b1=b1, ws=ws, bs=bs, wh=wh, bh=bh)


@functools.partial(jax.jit, static_argnames=("tile_b",))
def mlp_forward(x, params, *, tile_b=4096):
    """Forward pass. x: (B, 1) f32; params from prepare_params. Returns (B, 1)."""
    w1, b1, wh, bh = params["w1"], params["b1"], params["wh"], params["bh"]
    ws, bs = params["ws"], params["bs"]
    num_hidden = 0 if ws is None else ws.shape[0]
    W = w1.shape[0]
    batch = x.shape[0]

    # --- Static tile selection (shapes are compile-time constants under jit) ---
    b128 = _round_up(max(batch, 1), 128)
    tile = min(tile_b, b128)
    # Prefer >= 2 grid steps when that costs little extra padding, so the
    # "parallel" batch axis can shard across v7x's two TensorCores.
    if tile == b128 and tile >= 256:
        tile = _round_up(b128 // 2, 128)
    b_pad = _round_up(batch, tile)
    n_tiles = b_pad // tile
    sub = _choose_sub(tile)
    num_sub = tile // sub

    # Lane-dense, transposed layout: batch on the 128-lane axis. jnp.pad fuses
    # cleanly under jit (no zeros buffer + dynamic-update-slice).
    x_row = jnp.pad(x.reshape(1, -1).astype(jnp.float32),
                    ((0, 0), (0, b_pad - batch)))

    operands = [x_row, w1, b1]
    in_specs = [
        pl.BlockSpec((1, tile), lambda i: (0, i)),   # pipelined batch tile
        pl.BlockSpec((W, 1), lambda i: (0, 0)),      # VMEM-resident weights
        pl.BlockSpec((W, 1), lambda i: (0, 0)),
    ]
    if num_hidden > 0:
        operands += [ws, bs]
        in_specs += [
            pl.BlockSpec((num_hidden, W, W), lambda i: (0, 0, 0)),
            pl.BlockSpec((num_hidden, W, 1), lambda i: (0, 0, 0)),
        ]
    operands += [wh, bh]
    in_specs += [
        pl.BlockSpec((W, 1), lambda i: (0, 0)),
        pl.BlockSpec((1, 1), lambda i: (0, 0)),
    ]

    kernel = functools.partial(_mlp_kernel, num_hidden, sub, num_sub)

    out_row = pl.pallas_call(
        kernel,
        out_shape=jax.ShapeDtypeStruct((1, b_pad), jnp.float32),
        grid_spec=pltpu.PrefetchScalarGridSpec(
            num_scalar_prefetch=0,
            grid=(n_tiles,),
            in_specs=in_specs,
            out_specs=pl.BlockSpec((1, tile), lambda i: (0, i)),
        ),
        compiler_params=pltpu.CompilerParams(
            # Batch tiles are independent -> parallel (both TCs on v7x).
            dimension_semantics=("parallel",),
        ),
    )(*operands)

    return out_row[0, :batch].reshape(batch, 1)


def init_params(key, layer_width, num_layers):
    """Deterministic init matching the PyTorch module's nn.Linear shapes."""
    layer_widths = [1] + [layer_width] * num_layers
    weights, biases = [], []
    for in_f, out_f in zip(layer_widths, layer_widths[1:]):
        key, kw, kb = jax.random.split(key, 3)
        bound = 1.0 / (in_f ** 0.5)
        weights.append(jax.random.uniform(kw, (out_f, in_f), jnp.float32, -bound, bound))
        biases.append(jax.random.uniform(kb, (out_f,), jnp.float32, -bound, bound))
    key, kw, kb = jax.random.split(key, 3)
    bound = 1.0 / (layer_width ** 0.5)
    weights.append(jax.random.uniform(kw, (1, layer_width), jnp.float32, -bound, bound))
    biases.append(jax.random.uniform(kb, (1,), jnp.float32, -bound, bound))
    return weights, biases


def reference_forward(x, weights, biases):
    """Pure-JAX reference of the PyTorch forward (exact f32 matmuls)."""
    h = jnp.maximum(x * weights[0].T + biases[0], 0.0)          # Linear(1->W)+ReLU
    for w, b in zip(weights[1:-1], biases[1:-1]):
        h = jnp.maximum(
            jnp.dot(h, w.T, precision=lax.Precision.HIGHEST) + b, 0.0)
    return jnp.dot(h, weights[-1].T, precision=lax.Precision.HIGHEST) + biases[-1]


if __name__ == "__main__":
    model_cfg = {"layer_width": 32, "num_layers": 3}

    key = jax.random.PRNGKey(0)
    key, kx = jax.random.split(key)
    weights, biases = init_params(key, model_cfg["layer_width"], model_cfg["num_layers"])
    params = prepare_params(weights, biases)   # one-time weight prep

    # Small shape consistent with the module: (batch, 1) input.
    batch = 8
    x = jax.random.normal(kx, (batch, 1), jnp.float32)
    out = jax.block_until_ready(mlp_forward(x, params))
    ref = reference_forward(x, weights, biases)
    assert out.shape == (batch, 1)
    assert jnp.allclose(out, ref, atol=1e-4, rtol=1e-4)

    # Larger batch: exercises the 2-step parallel grid (v7x 2-TC sharding),
    # tile padding, in-kernel sub-slicing and VMEM-resident weight revisiting.
    key, kx2 = jax.random.split(key)
    batch2 = 1000
    x2 = jax.random.normal(kx2, (batch2, 1), jnp.float32)
    out2 = jax.block_until_ready(mlp_forward(x2, params))
    ref2 = reference_forward(x2, weights, biases)
    assert out2.shape == (batch2, 1)
    assert jnp.allclose(out2, ref2, atol=1e-4, rtol=1e-4)

    print("KERNEL_OK")
</pallas_src>

<mosaic_0001>
module attributes {stable_mosaic.version = 11 : i64} {
  func.func @_mlp_kernel(%arg0: i32, %arg1: memref<1x128xf32, #tpu.memory_space<vmem>>, %arg2: memref<32x1xf32, #tpu.memory_space<vmem>>, %arg3: memref<32x1xf32, #tpu.memory_space<vmem>>, %arg4: memref<2x32x32xf32, #tpu.memory_space<vmem>>, %arg5: memref<2x32x1xf32, #tpu.memory_space<vmem>>, %arg6: memref<32x1xf32, #tpu.memory_space<vmem>>, %arg7: memref<1x1xf32, #tpu.memory_space<vmem>>, %arg8: memref<1x128xf32, #tpu.memory_space<vmem>>) attributes {dimension_semantics = [#tpu.dimension_semantics<parallel>], iteration_bounds = array<i64: 1>, scalar_prefetch = 0 : i64, scratch_operands = 0 : i64, tpu.core_type = #tpu.core_type<tc>, window_params = [{transform_indices = @transform_0, window_bounds = array<i64: 1, 128>}, {pipeline_mode = #tpu.pipeline_mode<synchronous>, transform_indices = @transform_1, window_bounds = array<i64: 32, 1>}, {pipeline_mode = #tpu.pipeline_mode<synchronous>, transform_indices = @transform_2, window_bounds = array<i64: 32, 1>}, {pipeline_mode = #tpu.pipeline_mode<synchronous>, transform_indices = @transform_3, window_bounds = array<i64: 2, 32, 32>}, {pipeline_mode = #tpu.pipeline_mode<synchronous>, transform_indices = @transform_4, window_bounds = array<i64: 2, 32, 1>}, {pipeline_mode = #tpu.pipeline_mode<synchronous>, transform_indices = @transform_5, window_bounds = array<i64: 32, 1>}, {pipeline_mode = #tpu.pipeline_mode<synchronous>, transform_indices = @transform_6, window_bounds = array<i64: 1, 1>}, {transform_indices = @transform_7, window_bounds = array<i64: 1, 128>}]} {
    %c0 = arith.constant 0 : index
    %c0_0 = arith.constant 0 : index
    %0 = vector.load %arg2[%c0, %c0_0] : memref<32x1xf32, #tpu.memory_space<vmem>>, vector<32x1xf32>
    %c0_1 = arith.constant 0 : index
    %c0_2 = arith.constant 0 : index
    %1 = vector.load %arg3[%c0_1, %c0_2] : memref<32x1xf32, #tpu.memory_space<vmem>>, vector<32x1xf32>
    %c0_3 = arith.constant 0 : index
    %c0_4 = arith.constant 0 : index
    %c0_5 = arith.constant 0 : index
    %2 = vector.load %arg4[%c0_3, %c0_4, %c0_5] : memref<2x32x32xf32, #tpu.memory_space<vmem>>, vector<1x32x32xf32>
    %3 = vector.shape_cast %2 : vector<1x32x32xf32> to vector<32x32xf32>
    %c0_6 = arith.constant 0 : index
    %c0_7 = arith.constant 0 : index
    %c0_8 = arith.constant 0 : index
    %4 = vector.load %arg5[%c0_6, %c0_7, %c0_8] : memref<2x32x1xf32, #tpu.memory_space<vmem>>, vector<1x32x1xf32>
    %5 = vector.shape_cast %4 : vector<1x32x1xf32> to vector<32x1xf32>
    %c1 = arith.constant 1 : index
    %c0_9 = arith.constant 0 : index
    %c0_10 = arith.constant 0 : index
    %6 = vector.load %arg4[%c1, %c0_9, %c0_10] : memref<2x32x32xf32, #tpu.memory_space<vmem>>, vector<1x32x32xf32>
    %7 = vector.shape_cast %6 : vector<1x32x32xf32> to vector<32x32xf32>
    %c1_11 = arith.constant 1 : index
    %c0_12 = arith.constant 0 : index
    %c0_13 = arith.constant 0 : index
    %8 = vector.load %arg5[%c1_11, %c0_12, %c0_13] : memref<2x32x1xf32, #tpu.memory_space<vmem>>, vector<1x32x1xf32>
    %9 = vector.shape_cast %8 : vector<1x32x1xf32> to vector<32x1xf32>
    %c0_14 = arith.constant 0 : index
    %c0_15 = arith.constant 0 : index
    %10 = vector.load %arg6[%c0_14, %c0_15] : memref<32x1xf32, #tpu.memory_space<vmem>>, vector<32x1xf32>
    %c0_16 = arith.constant 0 : index
    %c0_17 = arith.constant 0 : index
    %11 = vector.load %arg7[%c0_16, %c0_17] : memref<1x1xf32, #tpu.memory_space<vmem>>, vector<1x1xf32>
    %c0_18 = arith.constant 0 : index
    %c0_19 = arith.constant 0 : index
    %12 = vector.load %arg1[%c0_18, %c0_19] : memref<1x128xf32, #tpu.memory_space<vmem>>, vector<1x128xf32>
    %13 = vector.broadcast %0 : vector<32x1xf32> to vector<32x128xf32>
    %14 = vector.broadcast %12 : vector<1x128xf32> to vector<32x128xf32>
    %15 = arith.mulf %13, %14 : vector<32x128xf32>
    %16 = vector.broadcast %1 : vector<32x1xf32> to vector<32x128xf32>
    %17 = arith.addf %15, %16 : vector<32x128xf32>
    %cst = arith.constant 0.000000e+00 : f32
    %18 = vector.broadcast %cst : f32 to vector<32x128xf32>
    %19 = arith.maximumf %17, %18 : vector<32x128xf32>
    %cst_20 = arith.constant dense<0.000000e+00> : vector<32x128xf32>
    %20 = tpu.matmul %3, %19, %cst_20 {dimension_numbers = #tpu.dot_dimension_numbers<[1], [0], [0], [1], [0, 0, 1, 1], [], []>, precision = #tpu.contract_precision<fp32>} : vector<32x32xf32>, vector<32x128xf32>, vector<32x128xf32> -> vector<32x128xf32>
    %21 = vector.broadcast %5 : vector<32x1xf32> to vector<32x128xf32>
    %22 = arith.addf %20, %21 : vector<32x128xf32>
    %cst_21 = arith.constant 0.000000e+00 : f32
    %23 = vector.broadcast %cst_21 : f32 to vector<32x128xf32>
    %24 = arith.maximumf %22, %23 : vector<32x128xf32>
    %cst_22 = arith.constant dense<0.000000e+00> : vector<32x128xf32>
    %25 = tpu.matmul %7, %24, %cst_22 {dimension_numbers = #tpu.dot_dimension_numbers<[1], [0], [0], [1], [0, 0, 1, 1], [], []>, precision = #tpu.contract_precision<fp32>} : vector<32x32xf32>, vector<32x128xf32>, vector<32x128xf32> -> vector<32x128xf32>
    %26 = vector.broadcast %9 : vector<32x1xf32> to vector<32x128xf32>
    %27 = arith.addf %25, %26 : vector<32x128xf32>
    %cst_23 = arith.constant 0.000000e+00 : f32
    %28 = vector.broadcast %cst_23 : f32 to vector<32x128xf32>
    %29 = arith.maximumf %27, %28 : vector<32x128xf32>
    %30 = vector.broadcast %10 : vector<32x1xf32> to vector<32x128xf32>
    %31 = arith.mulf %30, %29 : vector<32x128xf32>
    %cst_24 = arith.constant dense<0.000000e+00> : vector<128xf32>
    %32 = vector.multi_reduction <add>, %31, %cst_24 [0] : vector<32x128xf32> to vector<128xf32>
    %33 = vector.shape_cast %32 : vector<128xf32> to vector<1x128xf32>
    %34 = vector.broadcast %11 : vector<1x1xf32> to vector<1x128xf32>
    %35 = arith.addf %33, %34 : vector<1x128xf32>
    %c0_25 = arith.constant 0 : index
    %c0_26 = arith.constant 0 : index
    %36 = vector.load %arg8[%c0_25, %c0_26] : memref<1x128xf32, #tpu.memory_space<vmem>>, vector<1x128xf32>
    tpu.vector_store %arg8[%c0_25, %c0_26], %35 {strides = array<i32>} : memref<1x128xf32, #tpu.memory_space<vmem>>, vector<1x128xf32>,
    return
  }
  func.func @transform_0(%arg0: i32) -> (i32, i32) {
    %c0_i32 = arith.constant 0 : i32
    %c0_i32_0 = arith.constant 0 : i32
    return %c0_i32, %arg0 : i32, i32
  }
  func.func @transform_1(%arg0: i32) -> (i32, i32) {
    %c0_i32 = arith.constant 0 : i32
    %c0_i32_0 = arith.constant 0 : i32
    %c0_i32_1 = arith.constant 0 : i32
    return %c0_i32, %c0_i32_0 : i32, i32
  }
  func.func @transform_2(%arg0: i32) -> (i32, i32) {
    %c0_i32 = arith.constant 0 : i32
    %c0_i32_0 = arith.constant 0 : i32
    %c0_i32_1 = arith.constant 0 : i32
    return %c0_i32, %c0_i32_0 : i32, i32
  }
  func.func @transform_3(%arg0: i32) -> (i32, i32, i32) {
    %c0_i32 = arith.constant 0 : i32
    %c0_i32_0 = arith.constant 0 : i32
    %c0_i32_1 = arith.constant 0 : i32
    %c0_i32_2 = arith.constant 0 : i32
    return %c0_i32, %c0_i32_0, %c0_i32_1 : i32, i32, i32
  }
  func.func @transform_4(%arg0: i32) -> (i32, i32, i32) {
    %c0_i32 = arith.constant 0 : i32
    %c0_i32_0 = arith.constant 0 : i32
    %c0_i32_1 = arith.constant 0 : i32
    %c0_i32_2 = arith.constant 0 : i32
    return %c0_i32, %c0_i32_0, %c0_i32_1 : i32, i32, i32
  }
  func.func @transform_5(%arg0: i32) -> (i32, i32) {
    %c0_i32 = arith.constant 0 : i32
    %c0_i32_0 = arith.constant 0 : i32
    %c0_i32_1 = arith.constant 0 : i32
    return %c0_i32, %c0_i32_0 : i32, i32
  }
  func.func @transform_6(%arg0: i32) -> (i32, i32) {
    %c0_i32 = arith.constant 0 : i32
    %c0_i32_0 = arith.constant 0 : i32
    %c0_i32_1 = arith.constant 0 : i32
    return %c0_i32, %c0_i32_0 : i32, i32
  }
  func.func @transform_7(%arg0: i32) -> (i32, i32) {
    %c0_i32 = arith.constant 0 : i32
    %c0_i32_0 = arith.constant 0 : i32
    return %c0_i32, %arg0 : i32, i32
  }
}

</mosaic_0001>

<llo_original>
// kernel: mlp_forward.1
$region0: #{mlp_forward.1}
  #allocation0 [shape = 'u32[]', space=smem, size = 0x4, offset = 0x4, fixed_abs, tag = 'smem constant byte address 0x4 - core index']
  #allocation1 [shape = 'u32[144,128]{1,0:T(1,128)}', space=vmem, size = 0x12000, scoped, tag = 'internal scratch']
  #allocation2 [shape = 'f32[1,1]{1,0:T(1,128)S(1)}', space=vmem, size = 0x200, scoped, tag = 'scoped memory for mlp_forward.1']
  %s0 = inlined_call_operand.vmem [shape: f32[1,128], index: 0, kind: input, shape index: {}]
  %s1 = inlined_call_operand.vmem [shape: f32[32,1], index: 1, kind: input, shape index: {}]
  %s2 = inlined_call_operand.vmem [shape: f32[32,1], index: 2, kind: input, shape index: {}]
  %s3 = inlined_call_operand.vmem [shape: f32[2,32,32], index: 3, kind: input, shape index: {}]
  %s4 = inlined_call_operand.vmem [shape: f32[2,32,1], index: 4, kind: input, shape index: {}]
  %s5 = inlined_call_operand.vmem [shape: f32[32,1], index: 5, kind: input, shape index: {}]
  %s6 = inlined_call_operand.<no memory space> [shape: f32[1,1], index: 6, kind: input, shape index: {}]
  %s7 = inlined_call_operand.vmem [shape: f32[1,128], index: 7, kind: output, shape index: {}]
  %s8 = sld [smem:[#allocation0]]
  $region38: #{mlp_forward.1} parent=0
    _
  %s10 = ssub.s32 1, %s8
  %s11 = scalar_select 0, %s10, %s8
  %v12 = vstv %s6
  %13 = vst [vmem:[#allocation2] sm:$0x1] %v12
  // Predicated region
  $region2: #{mlp_forward.1} parent=0 // pred_check
    _
  $region3: #{mlp_forward.1} parent=0 // pred_check_branch
    %15 = sbr.rel (0) target = $region5
  $region4: #{mlp_forward.1} parent=0 // pred_region
    _
  $region5: #{mlp_forward.1} parent=0 // pred_fallthru
    _
  // Predicated region
  $region6: #{mlp_forward.1} parent=0 // pred_check
    _
  $region7: #{mlp_forward.1} parent=0 // pred_check_branch
    %17 = sbr.rel (0) target = $region9
  $region8: #{mlp_forward.1} parent=0 // pred_region
    _
  $region9: #{mlp_forward.1} parent=0 // pred_fallthru
    _
  // Predicated region
  $region10: #{mlp_forward.1} parent=0 // pred_check
    _
  $region11: #{mlp_forward.1} parent=0 // pred_check_branch
    %19 = sbr.rel (0) target = $region13
  $region12: #{mlp_forward.1} parent=0 // pred_region
    _
  $region13: #{mlp_forward.1} parent=0 // pred_fallthru
    _
  // Predicated region
  $region14: #{mlp_forward.1} parent=0 // pred_check
    _
  $region15: #{mlp_forward.1} parent=0 // pred_check_branch
    %21 = sbr.rel (0) target = $region17
  $region16: #{mlp_forward.1} parent=0 // pred_region
    _
  $region17: #{mlp_forward.1} parent=0 // pred_fallthru
    _
  // Predicated region
  $region18: #{mlp_forward.1} parent=0 // pred_check
    _
  $region19: #{mlp_forward.1} parent=0 // pred_check_branch
    %23 = sbr.rel (0) target = $region21
  $region20: #{mlp_forward.1} parent=0 // pred_region
    _
  $region21: #{mlp_forward.1} parent=0 // pred_fallthru
    _
  // Predicated region
  $region22: #{mlp_forward.1} parent=0 // pred_check
    _
  $region23: #{mlp_forward.1} parent=0 // pred_check_branch
    %25 = sbr.rel (0) target = $region25
  $region24: #{mlp_forward.1} parent=0 // pred_region
    _
  $region25: #{mlp_forward.1} parent=0 // pred_fallthru
    _
  // Predicated region
  $region26: #{mlp_forward.1} parent=0 // pred_check
    _
  $region27: #{mlp_forward.1} parent=0 // pred_check_branch
    %27 = sbr.rel (0) target = $region29
  $region28: #{mlp_forward.1} parent=0 // pred_region
    _
  $region29: #{mlp_forward.1} parent=0 // pred_fallthru
    _
  %v28 = vld [vmem:[%s1] sm:$0xff]
  %v29 = vld [vmem:[%s1 + $0x8] sm:$0xff]
  %v30 = vld [vmem:[%s1 + $0x10] sm:$0xff]
  %v31 = vld [vmem:[%s1 + $0x18] sm:$0xff]
  %v32 = vld [vmem:[%s2] sm:$0xff]
  %v33 = vld [vmem:[%s2 + $0x8] sm:$0xff]
  %v34 = vld [vmem:[%s2 + $0x10] sm:$0xff]
  %v35 = vld [vmem:[%s2 + $0x18] sm:$0xff]
  %v36 = vld [vmem:[%s3] sm:$0xff]
  %v37 = vld [vmem:[%s3 + $0x8] sm:$0xff]
  %v38 = vld [vmem:[%s3 + $0x10] sm:$0xff]
  %v39 = vld [vmem:[%s3 + $0x18] sm:$0xff]
  %v40 = vld [vmem:[%s4] sm:$0xff]
  %v41 = vld [vmem:[%s4 + $0x8] sm:$0xff]
  %v42 = vld [vmem:[%s4 + $0x10] sm:$0xff]
  %v43 = vld [vmem:[%s4 + $0x18] sm:$0xff]
  %s44 = scalar_lea.vmem %s3, 32
  %v45 = vld [vmem:[%s44] sm:$0xff]
  %v46 = vld [vmem:[%s44 + $0x8] sm:$0xff]
  %v47 = vld [vmem:[%s44 + $0x10] sm:$0xff]
  %v48 = vld [vmem:[%s44 + $0x18] sm:$0xff]
  %s49 = scalar_lea.vmem %s4, 32
  %v50 = vld [vmem:[%s49] sm:$0xff]
  %v51 = vld [vmem:[%s49 + $0x8] sm:$0xff]
  %v52 = vld [vmem:[%s49 + $0x10] sm:$0xff]
  %v53 = vld [vmem:[%s49 + $0x18] sm:$0xff]
  %v54 = vld [vmem:[%s5] sm:$0xff]
  %v55 = vld [vmem:[%s5 + $0x8] sm:$0xff]
  %v56 = vld [vmem:[%s5 + $0x10] sm:$0xff]
  %v57 = vld [vmem:[%s5 + $0x18] sm:$0xff]
  %v58 = vld [vmem:[#allocation2] sm:$0x1]
  %v59 = vld [vmem:[%s0] sm:$0x1]
  %61 = vset.pattern.permute.xlu0 0
  %62 = vperm.xlu0 %61, %v28
  %v63 = vpop.permute.xlu0 %62
  %66 = vset.pattern.permute.xlu0 0
  %67 = vperm.xlu0 %66, %v29
  %v68 = vpop.permute.xlu0 %67
  %71 = vset.pattern.permute.xlu0 0
  %72 = vperm.xlu0 %71, %v30
  %v73 = vpop.permute.xlu0 %72
  %76 = vset.pattern.permute.xlu0 0
  %77 = vperm.xlu0 %76, %v31
  %v78 = vpop.permute.xlu0 %77
  %v81 = vlaneseq
  %v82 = vshrl.u32 %v81, 7
  %v83 = vsub.s32 0, %v82
  %v84 = vrot.slane %v59, %v83
  %v86 = vmul.f32 %v63, %v84
  %v87 = vmul.f32 %v68, %v84
  %v88 = vmul.f32 %v73, %v84
  %v89 = vmul.f32 %v78, %v84
  %91 = vset.pattern.permute.xlu0 0
  %92 = vperm.xlu0 %91, %v32
  %v93 = vpop.permute.xlu0 %92
  %96 = vset.pattern.permute.xlu0 0
  %97 = vperm.xlu0 %96, %v33
  %v98 = vpop.permute.xlu0 %97
  %101 = vset.pattern.permute.xlu0 0
  %102 = vperm.xlu0 %101, %v34
  %v103 = vpop.permute.xlu0 %102
  %106 = vset.pattern.permute.xlu0 0
  %107 = vperm.xlu0 %106, %v35
  %v108 = vpop.permute.xlu0 %107
  %v110 = vadd.f32 %v86, %v93
  %v111 = vadd.f32 %v87, %v98
  %v112 = vadd.f32 %v88, %v103
  %v113 = vadd.f32 %v89, %v108
  %v114 = vmax.f32 %v110, 0.0
  %v115 = vmax.f32 %v111, 0.0
  %v116 = vmax.f32 %v112, 0.0
  %v117 = vmax.f32 %v113, 0.0
  %119 = vset.pattern.permute.xlu0 0
  %120 = vperm.xlu0 %119, %v40
  %v121 = vpop.permute.xlu0 %120
  %124 = vset.pattern.permute.xlu0 0
  %125 = vperm.xlu0 %124, %v41
  %v126 = vpop.permute.xlu0 %125
  %129 = vset.pattern.permute.xlu0 0
  %130 = vperm.xlu0 %129, %v42
  %v131 = vpop.permute.xlu0 %130
  %134 = vset.pattern.permute.xlu0 0
  %135 = vperm.xlu0 %134, %v43
  %v136 = vpop.permute.xlu0 %135
  %vm138 = vcmask 261120
  %v140 = vsel %vm138, %v36, 0
  %v143 = vsel %vm138, %v37, 0
  %v146 = vsel %vm138, %v38, 0
  %v149 = vsel %vm138, %v39, 0
  %151 = vmatprep.subr.mxu0 0.0
  %v152 = vand.u32 %v114, 4294901760
  %153 = vmatpush1.msra.mxu0 %v152
  %154 = vmatprep.subr.mxu0 0.0
  %v155 = vand.u32 %v115, 4294901760
  %156 = vmatpush1.msra.mxu0 %v155
  %157 = vmatprep.subr.mxu0 0.0
  %v158 = vand.u32 %v116, 4294901760
  %159 = vmatpush1.msra.mxu0 %v158
  %160 = vmatprep.subr.mxu0 0.0
  %v161 = vand.u32 %v117, 4294901760
  %162 = vmatpush1.msra.mxu0 %v161
  %163 = vmatprep.subr.mxu0 0.0
  %164 = vmatpush1.msra.mxu0 0.0
  %165 = vmatprep.subr.mxu0 0.0
  %166 = vmatpush1.msra.mxu0 0.0
  %167 = vmatprep.subr.mxu0 0.0
  %168 = vmatpush1.msra.mxu0 0.0
  %169 = vmatprep.subr.mxu0 0.0
  %170 = vmatpush1.msra.mxu0 0.0
  %171 = vmatprep.subr.mxu0 0.0
  %172 = vmatpush1.msra.mxu0 0.0
  %173 = vmatprep.subr.mxu0 0.0
  %174 = vmatpush1.msra.mxu0 0.0
  %175 = vmatprep.subr.mxu0 0.0
  %176 = vmatpush1.msra.mxu0 0.0
  %177 = vmatprep.subr.mxu0 0.0
  %178 = vmatpush1.msra.mxu0 0.0
  %179 = vmatprep.subr.mxu0 0.0
  %180 = vmatpush1.msra.mxu0 0.0
  %181 = vmatprep.subr.mxu0 0.0
  %182 = vmatpush1.msra.mxu0 0.0
  %183 = vmatprep.subr.mxu0 0.0
  %184 = vmatpush1.msra.mxu0 0.0
  %185 = vmatprep.subr.mxu0 0.0
  %186 = vmatpush1.msra.mxu0 0.0
  %187 = vmatprep.subr.mxu0 0.0
  %188 = vmatpush1.msra.mxu0 0.0
  %189 = vmatprep.subr.mxu0 0.0
  %190 = vmatpush1.msra.mxu0 0.0
  %191 = vmatprep.subr.mxu0 0.0
  %192 = vmatpush1.msra.mxu0 0.0
  %193 = vmatprep.subr.mxu0 0.0
  %194 = vmatpush1.msra.mxu0 0.0
  %195 = vmatprep.subr.mxu0 0.0
  %196 = vmatpush1.msra.mxu0 0.0
  %197 = vmatprep.subr.mxu0 0.0
  %198 = vmatpush1.msra.mxu0 0.0
  %199 = vmatprep.subr.mxu0 0.0
  %200 = vmatpush1.msra.mxu0 0.0
  %201 = vmatprep.subr.mxu0 0.0
  %202 = vmatpush1.msra.mxu0 0.0
  %203 = vmatprep.subr.mxu0 0.0
  %204 = vmatpush1.msra.mxu0 0.0
  %205 = vmatprep.subr.mxu0 0.0
  %206 = vmatpush1.msra.mxu0 0.0
  %207 = vmatprep.subr.mxu0 0.0
  %208 = vmatpush1.msra.mxu0 0.0
  %209 = vmatprep.subr.mxu0 0.0
  %210 = vmatpush1.msra.mxu0 0.0
  %211 = vmatprep.subr.mxu0 0.0
  %212 = vmatpush1.msra.mxu0 0.0
  %213 = vmatprep.subr.mxu0 0.0
  %214 = vmatpush1.msra.mxu0 0.0
  %215 = vmatprep.subr.mxu0 0.0
  %216 = vmatpush1.msra.mxu0 0.0
  %217 = vmatprep.subr.mxu0 0.0
  %218 = vmatpush1.msra.mxu0 0.0
  %219 = vmatprep.mubr.f32.mxu0 0.0
  %v220 = vand.u32 %v140, 4294901760
  %v221 = vsub.f32 %v140, %v220
  %v222 = vand.u32 %v221, 4294901760
  %v223 = vsub.f32 %v221, %v222
  %v224 = vand.u32 %v223, 4294901760
  %225 = vmatmul.mubr.f32.gmra.mrb[0].mxu0 %v224
  %v226 = vpop.f32.mrb[0].mxu0
  %v227 = vadd.f32 %v121, %v226
  %v228 = vpop.f32.mrb[0].mxu0
  %229 = vmatprep.mubr.f32.mxu0 0.0
  %v230 = vand.u32 %v143, 4294901760
  %v231 = vsub.f32 %v143, %v230
  %v232 = vand.u32 %v231, 4294901760
  %v233 = vsub.f32 %v231, %v232
  %v234 = vand.u32 %v233, 4294901760
  %235 = vmatmul.mubr.f32.gmra.mrb[0].mxu0 %v234
  %v236 = vpop.f32.mrb[0].mxu0
  %v237 = vadd.f32 %v126, %v236
  %v238 = vpop.f32.mrb[0].mxu0
  %239 = vmatprep.mubr.f32.mxu0 0.0
  %v240 = vand.u32 %v146, 4294901760
  %v241 = vsub.f32 %v146, %v240
  %v242 = vand.u32 %v241, 4294901760
  %v243 = vsub.f32 %v241, %v242
  %v244 = vand.u32 %v243, 4294901760
  %245 = vmatmul.mubr.f32.gmra.mrb[0].mxu0 %v244
  %v246 = vpop.f32.mrb[0].mxu0
  %v247 = vadd.f32 %v131, %v246
  %v248 = vpop.f32.mrb[0].mxu0
  %249 = vmatprep.mubr.f32.mxu0 0.0
  %v250 = vand.u32 %v149, 4294901760
  %v251 = vsub.f32 %v149, %v250
  %v252 = vand.u32 %v251, 4294901760
  %v253 = vsub.f32 %v251, %v252
  %v254 = vand.u32 %v253, 4294901760
  %255 = vmatmul.mubr.f32.gmra.mrb[0].mxu0 %v254
  %v256 = vpop.f32.mrb[0].mxu0
  %v257 = vadd.f32 %v136, %v256
  %v258 = vpop.f32.mrb[0].mxu0
  %259 = vdwg.mxu0
  %260 = vmatprep.subr.mxu0 0.0
  %v261 = vand.u32 %v114, 4294901760
  %v262 = vsub.f32 %v114, %v261
  %v263 = vand.u32 %v262, 4294901760
  %v264 = vsub.f32 %v262, %v263
  %v265 = vand.u32 %v264, 4294901760
  %266 = vmatpush1.msra.mxu0 %v265
  %267 = vmatprep.subr.mxu0 0.0
  %v268 = vand.u32 %v115, 4294901760
  %v269 = vsub.f32 %v115, %v268
  %v270 = vand.u32 %v269, 4294901760
  %v271 = vsub.f32 %v269, %v270
  %v272 = vand.u32 %v271, 4294901760
  %273 = vmatpush1.msra.mxu0 %v272
  %274 = vmatprep.subr.mxu0 0.0
  %v275 = vand.u32 %v116, 4294901760
  %v276 = vsub.f32 %v116, %v275
  %v277 = vand.u32 %v276, 4294901760
  %v278 = vsub.f32 %v276, %v277
  %v279 = vand.u32 %v278, 4294901760
  %280 = vmatpush1.msra.mxu0 %v279
  %281 = vmatprep.subr.mxu0 0.0
  %v282 = vand.u32 %v117, 4294901760
  %v283 = vsub.f32 %v117, %v282
  %v284 = vand.u32 %v283, 4294901760
  %v285 = vsub.f32 %v283, %v284
  %v286 = vand.u32 %v285, 4294901760
  %287 = vmatpush1.msra.mxu0 %v286
  %288 = vmatprep.subr.mxu0 0.0
  %289 = vmatpush1.msra.mxu0 0.0
  %290 = vmatprep.subr.mxu0 0.0
  %291 = vmatpush1.msra.mxu0 0.0
  %292 = vmatprep.subr.mxu0 0.0
  %293 = vmatpush1.msra.mxu0 0.0
  %294 = vmatprep.subr.mxu0 0.0
  %295 = vmatpush1.msra.mxu0 0.0
  %296 = vmatprep.subr.mxu0 0.0
  %297 = vmatpush1.msra.mxu0 0.0
  %298 = vmatprep.subr.mxu0 0.0
  %299 = vmatpush1.msra.mxu0 0.0
  %300 = vmatprep.subr.mxu0 0.0
  %301 = vmatpush1.msra.mxu0 0.0
  %302 = vmatprep.subr.mxu0 0.0
  %303 = vmatpush1.msra.mxu0 0.0
  %304 = vmatprep.subr.mxu0 0.0
  %305 = vmatpush1.msra.mxu0 0.0
  %306 = vmatprep.subr.mxu0 0.0
  %307 = vmatpush1.msra.mxu0 0.0
  %308 = vmatprep.subr.mxu0 0.0
  %309 = vmatpush1.msra.mxu0 0.0
  %310 = vmatprep.subr.mxu0 0.0
  %311 = vmatpush1.msra.mxu0 0.0
  %312 = vmatprep.subr.mxu0 0.0
  %313 = vmatpush1.msra.mxu0 0.0
  %314 = vmatprep.subr.mxu0 0.0
  %315 = vmatpush1.msra.mxu0 0.0
  %316 = vmatprep.subr.mxu0 0.0
  %317 = vmatpush1.msra.mxu0 0.0
  %318 = vmatprep.subr.mxu0 0.0
  %319 = vmatpush1.msra.mxu0 0.0
  %320 = vmatprep.subr.mxu0 0.0
  %321 = vmatpush1.msra.mxu0 0.0
  %322 = vmatprep.subr.mxu0 0.0
  %323 = vmatpush1.msra.mxu0 0.0
  %324 = vmatprep.subr.mxu0 0.0
  %325 = vmatpush1.msra.mxu0 0.0
  %326 = vmatprep.subr.mxu0 0.0
  %327 = vmatpush1.msra.mxu0 0.0
  %328 = vmatprep.subr.mxu0 0.0
  %329 = vmatpush1.msra.mxu0 0.0
  %330 = vmatprep.subr.mxu0 0.0
  %331 = vmatpush1.msra.mxu0 0.0
  %332 = vmatprep.subr.mxu0 0.0
  %333 = vmatpush1.msra.mxu0 0.0
  %334 = vmatprep.subr.mxu0 0.0
  %335 = vmatpush1.msra.mxu0 0.0
  %336 = vmatprep.subr.mxu0 0.0
  %337 = vmatpush1.msra.mxu0 0.0
  %338 = vmatprep.subr.mxu0 0.0
  %339 = vmatpush1.msra.mxu0 0.0
  %340 = vmatprep.subr.mxu0 0.0
  %341 = vmatpush1.msra.mxu0 0.0
  %342 = vmatprep.subr.mxu0 0.0
  %343 = vmatpush1.msra.mxu0 0.0
  %344 = vmatprep.mubr.f32.mxu0 0.0
  %v345 = vand.u32 %v140, 4294901760
  %346 = vmatmul.mubr.f32.gmra.mrb[0].mxu0 %v345
  %v347 = vpop.f32.mrb[0].mxu0
  %v348 = vadd.f32 %v227, %v347
  %v349 = vpop.f32.mrb[0].mxu0
  %350 = vmatprep.mubr.f32.mxu0 0.0
  %v351 = vand.u32 %v143, 4294901760
  %352 = vmatmul.mubr.f32.gmra.mrb[0].mxu0 %v351
  %v353 = vpop.f32.mrb[0].mxu0
  %v354 = vadd.f32 %v237, %v353
  %v355 = vpop.f32.mrb[0].mxu0
  %356 = vmatprep.mubr.f32.mxu0 0.0
  %v357 = vand.u32 %v146, 4294901760
  %358 = vmatmul.mubr.f32.gmra.mrb[0].mxu0 %v357
  %v359 = vpop.f32.mrb[0].mxu0
  %v360 = vadd.f32 %v247, %v359
  %v361 = vpop.f32.mrb[0].mxu0
  %362 = vmatprep.mubr.f32.mxu0 0.0
  %v363 = vand.u32 %v149, 4294901760
  %364 = vmatmul.mubr.f32.gmra.mrb[0].mxu0 %v363
  %v365 = vpop.f32.mrb[0].mxu0
  %v366 = vadd.f32 %v257, %v365
  %v367 = vpop.f32.mrb[0].mxu0
  %368 = vdwg.mxu0
  %369 = vmatprep.subr.mxu0 0.0
  %v370 = vand.u32 %v114, 4294901760
  %v371 = vsub.f32 %v114, %v370
  %372 = vmatpush1.msra.mxu0 %v371
  %373 = vmatprep.subr.mxu0 0.0
  %v374 = vand.u32 %v115, 4294901760
  %v375 = vsub.f32 %v115, %v374
  %376 = vmatpush1.msra.mxu0 %v375
  %377 = vmatprep.subr.mxu0 0.0
  %v378 = vand.u32 %v116, 4294901760
  %v379 = vsub.f32 %v116, %v378
  %380 = vmatpush1.msra.mxu0 %v379
  %381 = vmatprep.subr.mxu0 0.0
  %v382 = vand.u32 %v117, 4294901760
  %v383 = vsub.f32 %v117, %v382
  %384 = vmatpush1.msra.mxu0 %v383
  %385 = vmatprep.subr.mxu0 0.0
  %386 = vmatpush1.msra.mxu0 0.0
  %387 = vmatprep.subr.mxu0 0.0
  %388 = vmatpush1.msra.mxu0 0.0
  %389 = vmatprep.subr.mxu0 0.0
  %390 = vmatpush1.msra.mxu0 0.0
  %391 = vmatprep.subr.mxu0 0.0
  %392 = vmatpush1.msra.mxu0 0.0
  %393 = vmatprep.subr.mxu0 0.0
  %394 = vmatpush1.msra.mxu0 0.0
  %395 = vmatprep.subr.mxu0 0.0
  %396 = vmatpush1.msra.mxu0 0.0
  %397 = vmatprep.subr.mxu0 0.0
  %398 = vmatpush1.msra.mxu0 0.0
  %399 = vmatprep.subr.mxu0 0.0
  %400 = vmatpush1.msra.mxu0 0.0
  %401 = vmatprep.subr.mxu0 0.0
  %402 = vmatpush1.msra.mxu0 0.0
  %403 = vmatprep.subr.mxu0 0.0
  %404 = vmatpush1.msra.mxu0 0.0
  %405 = vmatprep.subr.mxu0 0.0
  %406 = vmatpush1.msra.mxu0 0.0
  %407 = vmatprep.subr.mxu0 0.0
  %408 = vmatpush1.msra.mxu0 0.0
  %409 = vmatprep.subr.mxu0 0.0
  %410 = vmatpush1.msra.mxu0 0.0
  %411 = vmatprep.subr.mxu0 0.0
  %412 = vmatpush1.msra.mxu0 0.0
  %413 = vmatprep.subr.mxu0 0.0
  %414 = vmatpush1.msra.mxu0 0.0
  %415 = vmatprep.subr.mxu0 0.0
  %416 = vmatpush1.msra.mxu0 0.0
  %417 = vmatprep.subr.mxu0 0.0
  %418 = vmatpush1.msra.mxu0 0.0
  %419 = vmatprep.subr.mxu0 0.0
  %420 = vmatpush1.msra.mxu0 0.0
  %421 = vmatprep.subr.mxu0 0.0
  %422 = vmatpush1.msra.mxu0 0.0
  %423 = vmatprep.subr.mxu0 0.0
  %424 = vmatpush1.msra.mxu0 0.0
  %425 = vmatprep.subr.mxu0 0.0
  %426 = vmatpush1.msra.mxu0 0.0
  %427 = vmatprep.subr.mxu0 0.0
  %428 = vmatpush1.msra.mxu0 0.0
  %429 = vmatprep.subr.mxu0 0.0
  %430 = vmatpush1.msra.mxu0 0.0
  %431 = vmatprep.subr.mxu0 0.0
  %432 = vmatpush1.msra.mxu0 0.0
  %433 = vmatprep.subr.mxu0 0.0
  %434 = vmatpush1.msra.mxu0 0.0
  %435 = vmatprep.subr.mxu0 0.0
  %436 = vmatpush1.msra.mxu0 0.0
  %437 = vmatprep.subr.mxu0 0.0
  %438 = vmatpush1.msra.mxu0 0.0
  %439 = vmatprep.subr.mxu0 0.0
  %440 = vmatpush1.msra.mxu0 0.0
  %441 = vmatprep.mubr.f32.mxu0 0.0
  %v442 = vand.u32 %v140, 4294901760
  %v443 = vsub.f32 %v140, %v442
  %444 = vmatmul.mubr.f32.gmra.mrb[0].mxu0 %v443
  %v445 = vpop.f32.mrb[0].mxu0
  %v446 = vadd.f32 %v348, %v445
  %v447 = vpop.f32.mrb[0].mxu0
  %448 = vmatprep.mubr.f32.mxu0 0.0
  %v449 = vand.u32 %v143, 4294901760
  %v450 = vsub.f32 %v143, %v449
  %451 = vmatmul.mubr.f32.gmra.mrb[0].mxu0 %v450
  %v452 = vpop.f32.mrb[0].mxu0
  %v453 = vadd.f32 %v354, %v452
  %v454 = vpop.f32.mrb[0].mxu0
  %455 = vmatprep.mubr.f32.mxu0 0.0
  %v456 = vand.u32 %v146, 4294901760
  %v457 = vsub.f32 %v146, %v456
  %458 = vmatmul.mubr.f32.gmra.mrb[0].mxu0 %v457
  %v459 = vpop.f32.mrb[0].mxu0
  %v460 = vadd.f32 %v360, %v459
  %v461 = vpop.f32.mrb[0].mxu0
  %462 = vmatprep.mubr.f32.mxu0 0.0
  %v463 = vand.u32 %v149, 4294901760
  %v464 = vsub.f32 %v149, %v463
  %465 = vmatmul.mubr.f32.gmra.mrb[0].mxu0 %v464
  %v466 = vpop.f32.mrb[0].mxu0
  %v467 = vadd.f32 %v366, %v466
  %v468 = vpop.f32.mrb[0].mxu0
  %469 = vdwg.mxu0
  %470 = vmatprep.subr.mxu0 0.0
  %v471 = vand.u32 %v114, 4294901760
  %472 = vmatpush1.msra.mxu0 %v471
  %473 = vmatprep.subr.mxu0 0.0
  %v474 = vand.u32 %v115, 4294901760
  %475 = vmatpush1.msra.mxu0 %v474
  %476 = vmatprep.subr.mxu0 0.0
  %v477 = vand.u32 %v116, 4294901760
  %478 = vmatpush1.msra.mxu0 %v477
  %479 = vmatprep.subr.mxu0 0.0
  %v480 = vand.u32 %v117, 4294901760
  %481 = vmatpush1.msra.mxu0 %v480
  %482 = vmatprep.subr.mxu0 0.0
  %483 = vmatpush1.msra.mxu0 0.0
  %484 = vmatprep.subr.mxu0 0.0
  %485 = vmatpush1.msra.mxu0 0.0
  %486 = vmatprep.subr.mxu0 0.0
  %487 = vmatpush1.msra.mxu0 0.0
  %488 = vmatprep.subr.mxu0 0.0
  %489 = vmatpush1.msra.mxu0 0.0
  %490 = vmatprep.subr.mxu0 0.0
  %491 = vmatpush1.msra.mxu0 0.0
  %492 = vmatprep.subr.mxu0 0.0
  %493 = vmatpush1.msra.mxu0 0.0
  %494 = vmatprep.subr.mxu0 0.0
  %495 = vmatpush1.msra.mxu0 0.0
  %496 = vmatprep.subr.mxu0 0.0
  %497 = vmatpush1.msra.mxu0 0.0
  %498 = vmatprep.subr.mxu0 0.0
  %499 = vmatpush1.msra.mxu0 0.0
  %500 = vmatprep.subr.mxu0 0.0
  %501 = vmatpush1.msra.mxu0 0.0
  %502 = vmatprep.subr.mxu0 0.0
  %503 = vmatpush1.msra.mxu0 0.0
  %504 = vmatprep.subr.mxu0 0.0
  %505 = vmatpush1.msra.mxu0 0.0
  %506 = vmatprep.subr.mxu0 0.0
  %507 = vmatpush1.msra.mxu0 0.0
  %508 = vmatprep.subr.mxu0 0.0
  %509 = vmatpush1.msra.mxu0 0.0
  %510 = vmatprep.subr.mxu0 0.0
  %511 = vmatpush1.msra.mxu0 0.0
  %512 = vmatprep.subr.mxu0 0.0
  %513 = vmatpush1.msra.mxu0 0.0
  %514 = vmatprep.subr.mxu0 0.0
  %515 = vmatpush1.msra.mxu0 0.0
  %516 = vmatprep.subr.mxu0 0.0
  %517 = vmatpush1.msra.mxu0 0.0
  %518 = vmatprep.subr.mxu0 0.0
  %519 = vmatpush1.msra.mxu0 0.0
  %520 = vmatprep.subr.mxu0 0.0
  %521 = vmatpush1.msra.mxu0 0.0
  %522 = vmatprep.subr.mxu0 0.0
  %523 = vmatpush1.msra.mxu0 0.0
  %524 = vmatprep.subr.mxu0 0.0
  %525 = vmatpush1.msra.mxu0 0.0
  %526 = vmatprep.subr.mxu0 0.0
  %527 = vmatpush1.msra.mxu0 0.0
  %528 = vmatprep.subr.mxu0 0.0
  %529 = vmatpush1.msra.mxu0 0.0
  %530 = vmatprep.subr.mxu0 0.0
  %531 = vmatpush1.msra.mxu0 0.0
  %532 = vmatprep.subr.mxu0 0.0
  %533 = vmatpush1.msra.mxu0 0.0
  %534 = vmatprep.subr.mxu0 0.0
  %535 = vmatpush1.msra.mxu0 0.0
  %536 = vmatprep.subr.mxu0 0.0
  %537 = vmatpush1.msra.mxu0 0.0
  %538 = vmatprep.mubr.f32.mxu0 0.0
  %v539 = vand.u32 %v140, 4294901760
  %v540 = vsub.f32 %v140, %v539
  %v541 = vand.u32 %v540, 4294901760
  %542 = vmatmul.mubr.f32.gmra.mrb[0].mxu0 %v541
  %v543 = vpop.f32.mrb[0].mxu0
  %v544 = vadd.f32 %v446, %v543
  %v545 = vpop.f32.mrb[0].mxu0
  %546 = vmatprep.mubr.f32.mxu0 0.0
  %v547 = vand.u32 %v143, 4294901760
  %v548 = vsub.f32 %v143, %v547
  %v549 = vand.u32 %v548, 4294901760
  %550 = vmatmul.mubr.f32.gmra.mrb[0].mxu0 %v549
  %v551 = vpop.f32.mrb[0].mxu0
  %v552 = vadd.f32 %v453, %v551
  %v553 = vpop.f32.mrb[0].mxu0
  %554 = vmatprep.mubr.f32.mxu0 0.0
  %v555 = vand.u32 %v146, 4294901760
  %v556 = vsub.f32 %v146, %v555
  %v557 = vand.u32 %v556, 4294901760
  %558 = vmatmul.mubr.f32.gmra.mrb[0].mxu0 %v557
  %v559 = vpop.f32.mrb[0].mxu0
  %v560 = vadd.f32 %v460, %v559
  %v561 = vpop.f32.mrb[0].mxu0
  %562 = vmatprep.mubr.f32.mxu0 0.0
  %v563 = vand.u32 %v149, 4294901760
  %v564 = vsub.f32 %v149, %v563
  %v565 = vand.u32 %v564, 4294901760
  %566 = vmatmul.mubr.f32.gmra.mrb[0].mxu0 %v565
  %v567 = vpop.f32.mrb[0].mxu0
  %v568 = vadd.f32 %v467, %v567
  %v569 = vpop.f32.mrb[0].mxu0
  %570 = vdwg.mxu0
  %571 = vmatprep.subr.mxu0 0.0
  %v572 = vand.u32 %v114, 4294901760
  %v573 = vsub.f32 %v114, %v572
  %v574 = vand.u32 %v573, 4294901760
  %575 = vmatpush1.msra.mxu0 %v574
  %576 = vmatprep.subr.mxu0 0.0
  %v577 = vand.u32 %v115, 4294901760
  %v578 = vsub.f32 %v115, %v577
  %v579 = vand.u32 %v578, 4294901760
  %580 = vmatpush1.msra.mxu0 %v579
  %581 = vmatprep.subr.mxu0 0.0
  %v582 = vand.u32 %v116, 4294901760
  %v583 = vsub.f32 %v116, %v582
  %v584 = vand.u32 %v583, 4294901760
  %585 = vmatpush1.msra.mxu0 %v584
  %586 = vmatprep.subr.mxu0 0.0
  %v587 = vand.u32 %v117, 4294901760
  %v588 = vsub.f32 %v117, %v587
  %v589 = vand.u32 %v588, 4294901760
  %590 = vmatpush1.msra.mxu0 %v589
  %591 = vmatprep.subr.mxu0 0.0
  %592 = vmatpush1.msra.mxu0 0.0
  %593 = vmatprep.subr.mxu0 0.0
  %594 = vmatpush1.msra.mxu0 0.0
  %595 = vmatprep.subr.mxu0 0.0
  %596 = vmatpush1.msra.mxu0 0.0
  %597 = vmatprep.subr.mxu0 0.0
  %598 = vmatpush1.msra.mxu0 0.0
  %599 = vmatprep.subr.mxu0 0.0
  %600 = vmatpush1.msra.mxu0 0.0
  %601 = vmatprep.subr.mxu0 0.0
  %602 = vmatpush1.msra.mxu0 0.0
  %603 = vmatprep.subr.mxu0 0.0
  %604 = vmatpush1.msra.mxu0 0.0
  %605 = vmatprep.subr.mxu0 0.0
  %606 = vmatpush1.msra.mxu0 0.0
  %607 = vmatprep.subr.mxu0 0.0
  %608 = vmatpush1.msra.mxu0 0.0
  %609 = vmatprep.subr.mxu0 0.0
  %610 = vmatpush1.msra.mxu0 0.0
  %611 = vmatprep.subr.mxu0 0.0
  %612 = vmatpush1.msra.mxu0 0.0
  %613 = vmatprep.subr.mxu0 0.0
  %614 = vmatpush1.msra.mxu0 0.0
  %615 = vmatprep.subr.mxu0 0.0
  %616 = vmatpush1.msra.mxu0 0.0
  %617 = vmatprep.subr.mxu0 0.0
  %618 = vmatpush1.msra.mxu0 0.0
  %619 = vmatprep.subr.mxu0 0.0
  %620 = vmatpush1.msra.mxu0 0.0
  %621 = vmatprep.subr.mxu0 0.0
  %622 = vmatpush1.msra.mxu0 0.0
  %623 = vmatprep.subr.mxu0 0.0
  %624 = vmatpush1.msra.mxu0 0.0
  %625 = vmatprep.subr.mxu0 0.0
  %626 = vmatpush1.msra.mxu0 0.0
  %627 = vmatprep.subr.mxu0 0.0
  %628 = vmatpush1.msra.mxu0 0.0
  %629 = vmatprep.subr.mxu0 0.0
  %630 = vmatpush1.msra.mxu0 0.0
  %631 = vmatprep.subr.mxu0 0.0
  %632 = vmatpush1.msra.mxu0 0.0
  %633 = vmatprep.subr.mxu0 0.0
  %634 = vmatpush1.msra.mxu0 0.0
  %635 = vmatprep.subr.mxu0 0.0
  %636 = vmatpush1.msra.mxu0 0.0
  %637 = vmatprep.subr.mxu0 0.0
  %638 = vmatpush1.msra.mxu0 0.0
  %639 = vmatprep.subr.mxu0 0.0
  %640 = vmatpush1.msra.mxu0 0.0
  %641 = vmatprep.subr.mxu0 0.0
  %642 = vmatpush1.msra.mxu0 0.0
  %643 = vmatprep.subr.mxu0 0.0
  %644 = vmatpush1.msra.mxu0 0.0
  %645 = vmatprep.subr.mxu0 0.0
  %646 = vmatpush1.msra.mxu0 0.0
  %647 = vmatprep.mubr.f32.mxu0 0.0
  %v648 = vand.u32 %v140, 4294901760
  %649 = vmatmul.mubr.f32.gmra.mrb[0].mxu0 %v648
  %v650 = vpop.f32.mrb[0].mxu0
  %v651 = vadd.f32 %v544, %v650
  %v652 = vpop.f32.mrb[0].mxu0
  %653 = vmatprep.mubr.f32.mxu0 0.0
  %v654 = vand.u32 %v143, 4294901760
  %655 = vmatmul.mubr.f32.gmra.mrb[0].mxu0 %v654
  %v656 = vpop.f32.mrb[0].mxu0
  %v657 = vadd.f32 %v552, %v656
  %v658 = vpop.f32.mrb[0].mxu0
  %659 = vmatprep.mubr.f32.mxu0 0.0
  %v660 = vand.u32 %v146, 4294901760
  %661 = vmatmul.mubr.f32.gmra.mrb[0].mxu0 %v660
  %v662 = vpop.f32.mrb[0].mxu0
  %v663 = vadd.f32 %v560, %v662
  %v664 = vpop.f32.mrb[0].mxu0
  %665 = vmatprep.mubr.f32.mxu0 0.0
  %v666 = vand.u32 %v149, 4294901760
  %667 = vmatmul.mubr.f32.gmra.mrb[0].mxu0 %v666
  %v668 = vpop.f32.mrb[0].mxu0
  %v669 = vadd.f32 %v568, %v668
  %v670 = vpop.f32.mrb[0].mxu0
  %671 = vdwg.mxu0
  %672 = vmatprep.subr.mxu0 0.0
  %v673 = vand.u32 %v114, 4294901760
  %674 = vmatpush1.msra.mxu0 %v673
  %675 = vmatprep.subr.mxu0 0.0
  %v676 = vand.u32 %v115, 4294901760
  %677 = vmatpush1.msra.mxu0 %v676
  %678 = vmatprep.subr.mxu0 0.0
  %v679 = vand.u32 %v116, 4294901760
  %680 = vmatpush1.msra.mxu0 %v679
  %681 = vmatprep.subr.mxu0 0.0
  %v682 = vand.u32 %v117, 4294901760
  %683 = vmatpush1.msra.mxu0 %v682
  %684 = vmatprep.subr.mxu0 0.0
  %685 = vmatpush1.msra.mxu0 0.0
  %686 = vmatprep.subr.mxu0 0.0
  %687 = vmatpush1.msra.mxu0 0.0
  %688 = vmatprep.subr.mxu0 0.0
  %689 = vmatpush1.msra.mxu0 0.0
  %690 = vmatprep.subr.mxu0 0.0
  %691 = vmatpush1.msra.mxu0 0.0
  %692 = vmatprep.subr.mxu0 0.0
  %693 = vmatpush1.msra.mxu0 0.0
  %694 = vmatprep.subr.mxu0 0.0
  %695 = vmatpush1.msra.mxu0 0.0
  %696 = vmatprep.subr.mxu0 0.0
  %697 = vmatpush1.msra.mxu0 0.0
  %698 = vmatprep.subr.mxu0 0.0
  %699 = vmatpush1.msra.mxu0 0.0
  %700 = vmatprep.subr.mxu0 0.0
  %701 = vmatpush1.msra.mxu0 0.0
  %702 = vmatprep.subr.mxu0 0.0
  %703 = vmatpush1.msra.mxu0 0.0
  %704 = vmatprep.subr.mxu0 0.0
  %705 = vmatpush1.msra.mxu0 0.0
  %706 = vmatprep.subr.mxu0 0.0
  %707 = vmatpush1.msra.mxu0 0.0
  %708 = vmatprep.subr.mxu0 0.0
  %709 = vmatpush1.msra.mxu0 0.0
  %710 = vmatprep.subr.mxu0 0.0
  %711 = vmatpush1.msra.mxu0 0.0
  %712 = vmatprep.subr.mxu0 0.0
  %713 = vmatpush1.msra.mxu0 0.0
  %714 = vmatprep.subr.mxu0 0.0
  %715 = vmatpush1.msra.mxu0 0.0
  %716 = vmatprep.subr.mxu0 0.0
  %717 = vmatpush1.msra.mxu0 0.0
  %718 = vmatprep.subr.mxu0 0.0
  %719 = vmatpush1.msra.mxu0 0.0
  %720 = vmatprep.subr.mxu0 0.0
  %721 = vmatpush1.msra.mxu0 0.0
  %722 = vmatprep.subr.mxu0 0.0
  %723 = vmatpush1.msra.mxu0 0.0
  %724 = vmatprep.subr.mxu0 0.0
  %725 = vmatpush1.msra.mxu0 0.0
  %726 = vmatprep.subr.mxu0 0.0
  %727 = vmatpush1.msra.mxu0 0.0
  %728 = vmatprep.subr.mxu0 0.0
  %729 = vmatpush1.msra.mxu0 0.0
  %730 = vmatprep.subr.mxu0 0.0
  %731 = vmatpush1.msra.mxu0 0.0
  %732 = vmatprep.subr.mxu0 0.0
  %733 = vmatpush1.msra.mxu0 0.0
  %734 = vmatprep.subr.mxu0 0.0
  %735 = vmatpush1.msra.mxu0 0.0
  %736 = vmatprep.subr.mxu0 0.0
  %737 = vmatpush1.msra.mxu0 0.0
  %738 = vmatprep.subr.mxu0 0.0
  %739 = vmatpush1.msra.mxu0 0.0
  %740 = vmatprep.mubr.f32.mxu0 0.0
  %v741 = vand.u32 %v140, 4294901760
  %742 = vmatmul.mubr.f32.gmra.mrb[0].mxu0 %v741
  %v743 = vpop.f32.mrb[0].mxu0
  %v744 = vadd.f32 %v651, %v743
  %v745 = vpop.f32.mrb[0].mxu0
  %746 = vmatprep.mubr.f32.mxu0 0.0
  %v747 = vand.u32 %v143, 4294901760
  %748 = vmatmul.mubr.f32.gmra.mrb[0].mxu0 %v747
  %v749 = vpop.f32.mrb[0].mxu0
  %v750 = vadd.f32 %v657, %v749
  %v751 = vpop.f32.mrb[0].mxu0
  %752 = vmatprep.mubr.f32.mxu0 0.0
  %v753 = vand.u32 %v146, 4294901760
  %754 = vmatmul.mubr.f32.gmra.mrb[0].mxu0 %v753
  %v755 = vpop.f32.mrb[0].mxu0
  %v756 = vadd.f32 %v663, %v755
  %v757 = vpop.f32.mrb[0].mxu0
  %758 = vmatprep.mubr.f32.mxu0 0.0
  %v759 = vand.u32 %v149, 4294901760
  %760 = vmatmul.mubr.f32.gmra.mrb[0].mxu0 %v759
  %v761 = vpop.f32.mrb[0].mxu0
  %v762 = vadd.f32 %v669, %v761
  %v763 = vpop.f32.mrb[0].mxu0
  %764 = vdwg.mxu0
  %v765 = vmax.f32 %v744, 0.0
  %v766 = vmax.f32 %v750, 0.0
  %v767 = vmax.f32 %v756, 0.0
  %v768 = vmax.f32 %v762, 0.0
  %770 = vset.pattern.permute.xlu0 0
  %771 = vperm.xlu0 %770, %v50
  %v772 = vpop.permute.xlu0 %771
  %775 = vset.pattern.permute.xlu0 0
  %776 = vperm.xlu0 %775, %v51
  %v777 = vpop.permute.xlu0 %776
  %780 = vset.pattern.permute.xlu0 0
  %781 = vperm.xlu0 %780, %v52
  %v782 = vpop.permute.xlu0 %781
  %785 = vset.pattern.permute.xlu0 0
  %786 = vperm.xlu0 %785, %v53
  %v787 = vpop.permute.xlu0 %786
  %v790 = vsel %vm138, %v45, 0
  %v793 = vsel %vm138, %v46, 0
  %v796 = vsel %vm138, %v47, 0
  %v799 = vsel %vm138, %v48, 0
  %801 = vmatprep.subr.mxu0 0.0
  %v802 = vand.u32 %v765, 4294901760
  %803 = vmatpush1.msra.mxu0 %v802
  %804 = vmatprep.subr.mxu0 0.0
  %v805 = vand.u32 %v766, 4294901760
  %806 = vmatpush1.msra.mxu0 %v805
  %807 = vmatprep.subr.mxu0 0.0
  %v808 = vand.u32 %v767, 4294901760
  %809 = vmatpush1.msra.mxu0 %v808
  %810 = vmatprep.subr.mxu0 0.0
  %v811 = vand.u32 %v768, 4294901760
  %812 = vmatpush1.msra.mxu0 %v811
  %813 = vmatprep.subr.mxu0 0.0
  %814 = vmatpush1.msra.mxu0 0.0
  %815 = vmatprep.subr.mxu0 0.0
  %816 = vmatpush1.msra.mxu0 0.0
  %817 = vmatprep.subr.mxu0 0.0
  %818 = vmatpush1.msra.mxu0 0.0
  %819 = vmatprep.subr.mxu0 0.0
  %820 = vmatpush1.msra.mxu0 0.0
  %821 = vmatprep.subr.mxu0 0.0
  %822 = vmatpush1.msra.mxu0 0.0
  %823 = vmatprep.subr.mxu0 0.0
  %824 = vmatpush1.msra.mxu0 0.0
  %825 = vmatprep.subr.mxu0 0.0
  %826 = vmatpush1.msra.mxu0 0.0
  %827 = vmatprep.subr.mxu0 0.0
  %828 = vmatpush1.msra.mxu0 0.0
  %829 = vmatprep.subr.mxu0 0.0
  %830 = vmatpush1.msra.mxu0 0.0
  %831 = vmatprep.subr.mxu0 0.0
  %832 = vmatpush1.msra.mxu0 0.0
  %833 = vmatprep.subr.mxu0 0.0
  %834 = vmatpush1.msra.mxu0 0.0
  %835 = vmatprep.subr.mxu0 0.0
  %836 = vmatpush1.msra.mxu0 0.0
  %837 = vmatprep.subr.mxu0 0.0
  %838 = vmatpush1.msra.mxu0 0.0
  %839 = vmatprep.subr.mxu0 0.0
  %840 = vmatpush1.msra.mxu0 0.0
  %841 = vmatprep.subr.mxu0 0.0
  %842 = vmatpush1.msra.mxu0 0.0
  %843 = vmatprep.subr.mxu0 0.0
  %844 = vmatpush1.msra.mxu0 0.0
  %845 = vmatprep.subr.mxu0 0.0
  %846 = vmatpush1.msra.mxu0 0.0
  %847 = vmatprep.subr.mxu0 0.0
  %848 = vmatpush1.msra.mxu0 0.0
  %849 = vmatprep.subr.mxu0 0.0
  %850 = vmatpush1.msra.mxu0 0.0
  %851 = vmatprep.subr.mxu0 0.0
  %852 = vmatpush1.msra.mxu0 0.0
  %853 = vmatprep.subr.mxu0 0.0
  %854 = vmatpush1.msra.mxu0 0.0
  %855 = vmatprep.subr.mxu0 0.0
  %856 = vmatpush1.msra.mxu0 0.0
  %857 = vmatprep.subr.mxu0 0.0
  %858 = vmatpush1.msra.mxu0 0.0
  %859 = vmatprep.subr.mxu0 0.0
  %860 = vmatpush1.msra.mxu0 0.0
  %861 = vmatprep.subr.mxu0 0.0
  %862 = vmatpush1.msra.mxu0 0.0
  %863 = vmatprep.subr.mxu0 0.0
  %864 = vmatpush1.msra.mxu0 0.0
  %865 = vmatprep.subr.mxu0 0.0
  %866 = vmatpush1.msra.mxu0 0.0
  %867 = vmatprep.subr.mxu0 0.0
  %868 = vmatpush1.msra.mxu0 0.0
  %869 = vmatprep.mubr.f32.mxu0 0.0
  %v870 = vand.u32 %v790, 4294901760
  %v871 = vsub.f32 %v790, %v870
  %v872 = vand.u32 %v871, 4294901760
  %v873 = vsub.f32 %v871, %v872
  %v874 = vand.u32 %v873, 4294901760
  %875 = vmatmul.mubr.f32.gmra.mrb[0].mxu0 %v874
  %v876 = vpop.f32.mrb[0].mxu0
  %v877 = vadd.f32 %v772, %v876
  %v878 = vpop.f32.mrb[0].mxu0
  %879 = vmatprep.mubr.f32.mxu0 0.0
  %v880 = vand.u32 %v793, 4294901760
  %v881 = vsub.f32 %v793, %v880
  %v882 = vand.u32 %v881, 4294901760
  %v883 = vsub.f32 %v881, %v882
  %v884 = vand.u32 %v883, 4294901760
  %885 = vmatmul.mubr.f32.gmra.mrb[0].mxu0 %v884
  %v886 = vpop.f32.mrb[0].mxu0
  %v887 = vadd.f32 %v777, %v886
  %v888 = vpop.f32.mrb[0].mxu0
  %889 = vmatprep.mubr.f32.mxu0 0.0
  %v890 = vand.u32 %v796, 4294901760
  %v891 = vsub.f32 %v796, %v890
  %v892 = vand.u32 %v891, 4294901760
  %v893 = vsub.f32 %v891, %v892
  %v894 = vand.u32 %v893, 4294901760
  %895 = vmatmul.mubr.f32.gmra.mrb[0].mxu0 %v894
  %v896 = vpop.f32.mrb[0].mxu0
  %v897 = vadd.f32 %v782, %v896
  %v898 = vpop.f32.mrb[0].mxu0
  %899 = vmatprep.mubr.f32.mxu0 0.0
  %v900 = vand.u32 %v799, 4294901760
  %v901 = vsub.f32 %v799, %v900
  %v902 = vand.u32 %v901, 4294901760
  %v903 = vsub.f32 %v901, %v902
  %v904 = vand.u32 %v903, 4294901760
  %905 = vmatmul.mubr.f32.gmra.mrb[0].mxu0 %v904
  %v906 = vpop.f32.mrb[0].mxu0
  %v907 = vadd.f32 %v787, %v906
  %v908 = vpop.f32.mrb[0].mxu0
  %909 = vdwg.mxu0
  %910 = vmatprep.subr.mxu0 0.0
  %v911 = vand.u32 %v765, 4294901760
  %v912 = vsub.f32 %v765, %v911
  %v913 = vand.u32 %v912, 4294901760
  %v914 = vsub.f32 %v912, %v913
  %v915 = vand.u32 %v914, 4294901760
  %916 = vmatpush1.msra.mxu0 %v915
  %917 = vmatprep.subr.mxu0 0.0
  %v918 = vand.u32 %v766, 4294901760
  %v919 = vsub.f32 %v766, %v918
  %v920 = vand.u32 %v919, 4294901760
  %v921 = vsub.f32 %v919, %v920
  %v922 = vand.u32 %v921, 4294901760
  %923 = vmatpush1.msra.mxu0 %v922
  %924 = vmatprep.subr.mxu0 0.0
  %v925 = vand.u32 %v767, 4294901760
  %v926 = vsub.f32 %v767, %v925
  %v927 = vand.u32 %v926, 4294901760
  %v928 = vsub.f32 %v926, %v927
  %v929 = vand.u32 %v928, 4294901760
  %930 = vmatpush1.msra.mxu0 %v929
  %931 = vmatprep.subr.mxu0 0.0
  %v932 = vand.u32 %v768, 4294901760
  %v933 = vsub.f32 %v768, %v932
  %v934 = vand.u32 %v933, 4294901760
  %v935 = vsub.f32 %v933, %v934
  %v936 = vand.u32 %v935, 4294901760
  %937 = vmatpush1.msra.mxu0 %v936
  %938 = vmatprep.subr.mxu0 0.0
  %939 = vmatpush1.msra.mxu0 0.0
  %940 = vmatprep.subr.mxu0 0.0
  %941 = vmatpush1.msra.mxu0 0.0
  %942 = vmatprep.subr.mxu0 0.0
  %943 = vmatpush1.msra.mxu0 0.0
  %944 = vmatprep.subr.mxu0 0.0
  %945 = vmatpush1.msra.mxu0 0.0
  %946 = vmatprep.subr.mxu0 0.0
  %947 = vmatpush1.msra.mxu0 0.0
  %948 = vmatprep.subr.mxu0 0.0
  %949 = vmatpush1.msra.mxu0 0.0
  %950 = vmatprep.subr.mxu0 0.0
  %951 = vmatpush1.msra.mxu0 0.0
  %952 = vmatprep.subr.mxu0 0.0
  %953 = vmatpush1.msra.mxu0 0.0
  %954 = vmatprep.subr.mxu0 0.0
  %955 = vmatpush1.msra.mxu0 0.0
  %956 = vmatprep.subr.mxu0 0.0
  %957 = vmatpush1.msra.mxu0 0.0
  %958 = vmatprep.subr.mxu0 0.0
  %959 = vmatpush1.msra.mxu0 0.0
  %960 = vmatprep.subr.mxu0 0.0
  %961 = vmatpush1.msra.mxu0 0.0
  %962 = vmatprep.subr.mxu0 0.0
  %963 = vmatpush1.msra.mxu0 0.0
  %964 = vmatprep.subr.mxu0 0.0
  %965 = vmatpush1.msra.mxu0 0.0
  %966 = vmatprep.subr.mxu0 0.0
  %967 = vmatpush1.msra.mxu0 0.0
  %968 = vmatprep.subr.mxu0 0.0
  %969 = vmatpush1.msra.mxu0 0.0
  %970 = vmatprep.subr.mxu0 0.0
  %971 = vmatpush1.msra.mxu0 0.0
  %972 = vmatprep.subr.mxu0 0.0
  %973 = vmatpush1.msra.mxu0 0.0
  %974 = vmatprep.subr.mxu0 0.0
  %975 = vmatpush1.msra.mxu0 0.0
  %976 = vmatprep.subr.mxu0 0.0
  %977 = vmatpush1.msra.mxu0 0.0
  %978 = vmatprep.subr.mxu0 0.0
  %979 = vmatpush1.msra.mxu0 0.0
  %980 = vmatprep.subr.mxu0 0.0
  %981 = vmatpush1.msra.mxu0 0.0
  %982 = vmatprep.subr.mxu0 0.0
  %983 = vmatpush1.msra.mxu0 0.0
  %984 = vmatprep.subr.mxu0 0.0
  %985 = vmatpush1.msra.mxu0 0.0
  %986 = vmatprep.subr.mxu0 0.0
  %987 = vmatpush1.msra.mxu0 0.0
  %988 = vmatprep.subr.mxu0 0.0
  %989 = vmatpush1.msra.mxu0 0.0
  %990 = vmatprep.subr.mxu0 0.0
  %991 = vmatpush1.msra.mxu0 0.0
  %992 = vmatprep.subr.mxu0 0.0
  %993 = vmatpush1.msra.mxu0 0.0
  %994 = vmatprep.mubr.f32.mxu0 0.0
  %v995 = vand.u32 %v790, 4294901760
  %996 = vmatmul.mubr.f32.gmra.mrb[0].mxu0 %v995
  %v997 = vpop.f32.mrb[0].mxu0
  %v998 = vadd.f32 %v877, %v997
  %v999 = vpop.f32.mrb[0].mxu0
  %1000 = vmatprep.mubr.f32.mxu0 0.0
  %v1001 = vand.u32 %v793, 4294901760
  %1002 = vmatmul.mubr.f32.gmra.mrb[0].mxu0 %v1001
  %v1003 = vpop.f32.mrb[0].mxu0
  %v1004 = vadd.f32 %v887, %v1003
  %v1005 = vpop.f32.mrb[0].mxu0
  %1006 = vmatprep.mubr.f32.mxu0 0.0
  %v1007 = vand.u32 %v796, 4294901760
  %1008 = vmatmul.mubr.f32.gmra.mrb[0].mxu0 %v1007
  %v1009 = vpop.f32.mrb[0].mxu0
  %v1010 = vadd.f32 %v897, %v1009
  %v1011 = vpop.f32.mrb[0].mxu0
  %1012 = vmatprep.mubr.f32.mxu0 0.0
  %v1013 = vand.u32 %v799, 4294901760
  %1014 = vmatmul.mubr.f32.gmra.mrb[0].mxu0 %v1013
  %v1015 = vpop.f32.mrb[0].mxu0
  %v1016 = vadd.f32 %v907, %v1015
  %v1017 = vpop.f32.mrb[0].mxu0
  %1018 = vdwg.mxu0
  %1019 = vmatprep.subr.mxu0 0.0
  %v1020 = vand.u32 %v765, 4294901760
  %v1021 = vsub.f32 %v765, %v1020
  %1022 = vmatpush1.msra.mxu0 %v1021
  %1023 = vmatprep.subr.mxu0 0.0
  %v1024 = vand.u32 %v766, 4294901760
  %v1025 = vsub.f32 %v766, %v1024
  %1026 = vmatpush1.msra.mxu0 %v1025
  %1027 = vmatprep.subr.mxu0 0.0
  %v1028 = vand.u32 %v767, 4294901760
  %v1029 = vsub.f32 %v767, %v1028
  %1030 = vmatpush1.msra.mxu0 %v1029
  %1031 = vmatprep.subr.mxu0 0.0
  %v1032 = vand.u32 %v768, 4294901760
  %v1033 = vsub.f32 %v768, %v1032
  %1034 = vmatpush1.msra.mxu0 %v1033
  %1035 = vmatprep.subr.mxu0 0.0
  %1036 = vmatpush1.msra.mxu0 0.0
  %1037 = vmatprep.subr.mxu0 0.0
  %1038 = vmatpush1.msra.mxu0 0.0
  %1039 = vmatprep.subr.mxu0 0.0
  %1040 = vmatpush1.msra.mxu0 0.0
  %1041 = vmatprep.subr.mxu0 0.0
  %1042 = vmatpush1.msra.mxu0 0.0
  %1043 = vmatprep.subr.mxu0 0.0
  %1044 = vmatpush1.msra.mxu0 0.0
  %1045 = vmatprep.subr.mxu0 0.0
  %1046 = vmatpush1.msra.mxu0 0.0
  %1047 = vmatprep.subr.mxu0 0.0
  %1048 = vmatpush1.msra.mxu0 0.0
  %1049 = vmatprep.subr.mxu0 0.0
  %1050 = vmatpush1.msra.mxu0 0.0
  %1051 = vmatprep.subr.mxu0 0.0
  %1052 = vmatpush1.msra.mxu0 0.0
  %1053 = vmatprep.subr.mxu0 0.0
  %1054 = vmatpush1.msra.mxu0 0.0
  %1055 = vmatprep.subr.mxu0 0.0
  %1056 = vmatpush1.msra.mxu0 0.0
  %1057 = vmatprep.subr.mxu0 0.0
  %1058 = vmatpush1.msra.mxu0 0.0
  %1059 = vmatprep.subr.mxu0 0.0
  %1060 = vmatpush1.msra.mxu0 0.0
  %1061 = vmatprep.subr.mxu0 0.0
  %1062 = vmatpush1.msra.mxu0 0.0
  %1063 = vmatprep.subr.mxu0 0.0
  %1064 = vmatpush1.msra.mxu0 0.0
  %1065 = vmatprep.subr.mxu0 0.0
  %1066 = vmatpush1.msra.mxu0 0.0
  %1067 = vmatprep.subr.mxu0 0.0
  %1068 = vmatpush1.msra.mxu0 0.0
  %1069 = vmatprep.subr.mxu0 0.0
  %1070 = vmatpush1.msra.mxu0 0.0
  %1071 = vmatprep.subr.mxu0 0.0
  %1072 = vmatpush1.msra.mxu0 0.0
  %1073 = vmatprep.subr.mxu0 0.0
  %1074 = vmatpush1.msra.mxu0 0.0
  %1075 = vmatprep.subr.mxu0 0.0
  %1076 = vmatpush1.msra.mxu0 0.0
  %1077 = vmatprep.subr.mxu0 0.0
  %1078 = vmatpush1.msra.mxu0 0.0
  %1079 = vmatprep.subr.mxu0 0.0
  %1080 = vmatpush1.msra.mxu0 0.0
  %1081 = vmatprep.subr.mxu0 0.0
  %1082 = vmatpush1.msra.mxu0 0.0
  %1083 = vmatprep.subr.mxu0 0.0
  %1084 = vmatpush1.msra.mxu0 0.0
  %1085 = vmatprep.subr.mxu0 0.0
  %1086 = vmatpush1.msra.mxu0 0.0
  %1087 = vmatprep.subr.mxu0 0.0
  %1088 = vmatpush1.msra.mxu0 0.0
  %1089 = vmatprep.subr.mxu0 0.0
  %1090 = vmatpush1.msra.mxu0 0.0
  %1091 = vmatprep.mubr.f32.mxu0 0.0
  %v1092 = vand.u32 %v790, 4294901760
  %v1093 = vsub.f32 %v790, %v1092
  %1094 = vmatmul.mubr.f32.gmra.mrb[0].mxu0 %v1093
  %v1095 = vpop.f32.mrb[0].mxu0
  %v1096 = vadd.f32 %v998, %v1095
  %v1097 = vpop.f32.mrb[0].mxu0
  %1098 = vmatprep.mubr.f32.mxu0 0.0
  %v1099 = vand.u32 %v793, 4294901760
  %v1100 = vsub.f32 %v793, %v1099
  %1101 = vmatmul.mubr.f32.gmra.mrb[0].mxu0 %v1100
  %v1102 = vpop.f32.mrb[0].mxu0
  %v1103 = vadd.f32 %v1004, %v1102
  %v1104 = vpop.f32.mrb[0].mxu0
  %1105 = vmatprep.mubr.f32.mxu0 0.0
  %v1106 = vand.u32 %v796, 4294901760
  %v1107 = vsub.f32 %v796, %v1106
  %1108 = vmatmul.mubr.f32.gmra.mrb[0].mxu0 %v1107
  %v1109 = vpop.f32.mrb[0].mxu0
  %v1110 = vadd.f32 %v1010, %v1109
  %v1111 = vpop.f32.mrb[0].mxu0
  %1112 = vmatprep.mubr.f32.mxu0 0.0
  %v1113 = vand.u32 %v799, 4294901760
  %v1114 = vsub.f32 %v799, %v1113
  %1115 = vmatmul.mubr.f32.gmra.mrb[0].mxu0 %v1114
  %v1116 = vpop.f32.mrb[0].mxu0
  %v1117 = vadd.f32 %v1016, %v1116
  %v1118 = vpop.f32.mrb[0].mxu0
  %1119 = vdwg.mxu0
  %1120 = vmatprep.subr.mxu0 0.0
  %v1121 = vand.u32 %v765, 4294901760
  %1122 = vmatpush1.msra.mxu0 %v1121
  %1123 = vmatprep.subr.mxu0 0.0
  %v1124 = vand.u32 %v766, 4294901760
  %1125 = vmatpush1.msra.mxu0 %v1124
  %1126 = vmatprep.subr.mxu0 0.0
  %v1127 = vand.u32 %v767, 4294901760
  %1128 = vmatpush1.msra.mxu0 %v1127
  %1129 = vmatprep.subr.mxu0 0.0
  %v1130 = vand.u32 %v768, 4294901760
  %1131 = vmatpush1.msra.mxu0 %v1130
  %1132 = vmatprep.subr.mxu0 0.0
  %1133 = vmatpush1.msra.mxu0 0.0
  %1134 = vmatprep.subr.mxu0 0.0
  %1135 = vmatpush1.msra.mxu0 0.0
  %1136 = vmatprep.subr.mxu0 0.0
  %1137 = vmatpush1.msra.mxu0 0.0
  %1138 = vmatprep.subr.mxu0 0.0
  %1139 = vmatpush1.msra.mxu0 0.0
  %1140 = vmatprep.subr.mxu0 0.0
  %1141 = vmatpush1.msra.mxu0 0.0
  %1142 = vmatprep.subr.mxu0 0.0
  %1143 = vmatpush1.msra.mxu0 0.0
  %1144 = vmatprep.subr.mxu0 0.0
  %1145 = vmatpush1.msra.mxu0 0.0
  %1146 = vmatprep.subr.mxu0 0.0
  %1147 = vmatpush1.msra.mxu0 0.0
  %1148 = vmatprep.subr.mxu0 0.0
  %1149 = vmatpush1.msra.mxu0 0.0
  %1150 = vmatprep.subr.mxu0 0.0
  %1151 = vmatpush1.msra.mxu0 0.0
  %1152 = vmatprep.subr.mxu0 0.0
  %1153 = vmatpush1.msra.mxu0 0.0
  %1154 = vmatprep.subr.mxu0 0.0
  %1155 = vmatpush1.msra.mxu0 0.0
  %1156 = vmatprep.subr.mxu0 0.0
  %1157 = vmatpush1.msra.mxu0 0.0
  %1158 = vmatprep.subr.mxu0 0.0
  %1159 = vmatpush1.msra.mxu0 0.0
  %1160 = vmatprep.subr.mxu0 0.0
  %1161 = vmatpush1.msra.mxu0 0.0
  %1162 = vmatprep.subr.mxu0 0.0
  %1163 = vmatpush1.msra.mxu0 0.0
  %1164 = vmatprep.subr.mxu0 0.0
  %1165 = vmatpush1.msra.mxu0 0.0
  %1166 = vmatprep.subr.mxu0 0.0
  %1167 = vmatpush1.msra.mxu0 0.0
  %1168 = vmatprep.subr.mxu0 0.0
  %1169 = vmatpush1.msra.mxu0 0.0
  %1170 = vmatprep.subr.mxu0 0.0
  %1171 = vmatpush1.msra.mxu0 0.0
  %1172 = vmatprep.subr.mxu0 0.0
  %1173 = vmatpush1.msra.mxu0 0.0
  %1174 = vmatprep.subr.mxu0 0.0
  %1175 = vmatpush1.msra.mxu0 0.0
  %1176 = vmatprep.subr.mxu0 0.0
  %1177 = vmatpush1.msra.mxu0 0.0
  %1178 = vmatprep.subr.mxu0 0.0
  %1179 = vmatpush1.msra.mxu0 0.0
  %1180 = vmatprep.subr.mxu0 0.0
  %1181 = vmatpush1.msra.mxu0 0.0
  %1182 = vmatprep.subr.mxu0 0.0
  %1183 = vmatpush1.msra.mxu0 0.0
  %1184 = vmatprep.subr.mxu0 0.0
  %1185 = vmatpush1.msra.mxu0 0.0
  %1186 = vmatprep.subr.mxu0 0.0
  %1187 = vmatpush1.msra.mxu0 0.0
  %1188 = vmatprep.mubr.f32.mxu0 0.0
  %v1189 = vand.u32 %v790, 4294901760
  %v1190 = vsub.f32 %v790, %v1189
  %v1191 = vand.u32 %v1190, 4294901760
  %1192 = vmatmul.mubr.f32.gmra.mrb[0].mxu0 %v1191
  %v1193 = vpop.f32.mrb[0].mxu0
  %v1194 = vadd.f32 %v1096, %v1193
  %v1195 = vpop.f32.mrb[0].mxu0
  %1196 = vmatprep.mubr.f32.mxu0 0.0
  %v1197 = vand.u32 %v793, 4294901760
  %v1198 = vsub.f32 %v793, %v1197
  %v1199 = vand.u32 %v1198, 4294901760
  %1200 = vmatmul.mubr.f32.gmra.mrb[0].mxu0 %v1199
  %v1201 = vpop.f32.mrb[0].mxu0
  %v1202 = vadd.f32 %v1103, %v1201
  %v1203 = vpop.f32.mrb[0].mxu0
  %1204 = vmatprep.mubr.f32.mxu0 0.0
  %v1205 = vand.u32 %v796, 4294901760
  %v1206 = vsub.f32 %v796, %v1205
  %v1207 = vand.u32 %v1206, 4294901760
  %1208 = vmatmul.mubr.f32.gmra.mrb[0].mxu0 %v1207
  %v1209 = vpop.f32.mrb[0].mxu0
  %v1210 = vadd.f32 %v1110, %v1209
  %v1211 = vpop.f32.mrb[0].mxu0
  %1212 = vmatprep.mubr.f32.mxu0 0.0
  %v1213 = vand.u32 %v799, 4294901760
  %v1214 = vsub.f32 %v799, %v1213
  %v1215 = vand.u32 %v1214, 4294901760
  %1216 = vmatmul.mubr.f32.gmra.mrb[0].mxu0 %v1215
  %v1217 = vpop.f32.mrb[0].mxu0
  %v1218 = vadd.f32 %v1117, %v1217
  %v1219 = vpop.f32.mrb[0].mxu0
  %1220 = vdwg.mxu0
  %1221 = vmatprep.subr.mxu0 0.0
  %v1222 = vand.u32 %v765, 4294901760
  %v1223 = vsub.f32 %v765, %v1222
  %v1224 = vand.u32 %v1223, 4294901760
  %1225 = vmatpush1.msra.mxu0 %v1224
  %1226 = vmatprep.subr.mxu0 0.0
  %v1227 = vand.u32 %v766, 4294901760
  %v1228 = vsub.f32 %v766, %v1227
  %v1229 = vand.u32 %v1228, 4294901760
  %1230 = vmatpush1.msra.mxu0 %v1229
  %1231 = vmatprep.subr.mxu0 0.0
  %v1232 = vand.u32 %v767, 4294901760
  %v1233 = vsub.f32 %v767, %v1232
  %v1234 = vand.u32 %v1233, 4294901760
  %1235 = vmatpush1.msra.mxu0 %v1234
  %1236 = vmatprep.subr.mxu0 0.0
  %v1237 = vand.u32 %v768, 4294901760
  %v1238 = vsub.f32 %v768, %v1237
  %v1239 = vand.u32 %v1238, 4294901760
  %1240 = vmatpush1.msra.mxu0 %v1239
  %1241 = vmatprep.subr.mxu0 0.0
  %1242 = vmatpush1.msra.mxu0 0.0
  %1243 = vmatprep.subr.mxu0 0.0
  %1244 = vmatpush1.msra.mxu0 0.0
  %1245 = vmatprep.subr.mxu0 0.0
  %1246 = vmatpush1.msra.mxu0 0.0
  %1247 = vmatprep.subr.mxu0 0.0
  %1248 = vmatpush1.msra.mxu0 0.0
  %1249 = vmatprep.subr.mxu0 0.0
  %1250 = vmatpush1.msra.mxu0 0.0
  %1251 = vmatprep.subr.mxu0 0.0
  %1252 = vmatpush1.msra.mxu0 0.0
  %1253 = vmatprep.subr.mxu0 0.0
  %1254 = vmatpush1.msra.mxu0 0.0
  %1255 = vmatprep.subr.mxu0 0.0
  %1256 = vmatpush1.msra.mxu0 0.0
  %1257 = vmatprep.subr.mxu0 0.0
  %1258 = vmatpush1.msra.mxu0 0.0
  %1259 = vmatprep.subr.mxu0 0.0
  %1260 = vmatpush1.msra.mxu0 0.0
  %1261 = vmatprep.subr.mxu0 0.0
  %1262 = vmatpush1.msra.mxu0 0.0
  %1263 = vmatprep.subr.mxu0 0.0
  %1264 = vmatpush1.msra.mxu0 0.0
  %1265 = vmatprep.subr.mxu0 0.0
  %1266 = vmatpush1.msra.mxu0 0.0
  %1267 = vmatprep.subr.mxu0 0.0
  %1268 = vmatpush1.msra.mxu0 0.0
  %1269 = vmatprep.subr.mxu0 0.0
  %1270 = vmatpush1.msra.mxu0 0.0
  %1271 = vmatprep.subr.mxu0 0.0
  %1272 = vmatpush1.msra.mxu0 0.0
  %1273 = vmatprep.subr.mxu0 0.0
  %1274 = vmatpush1.msra.mxu0 0.0
  %1275 = vmatprep.subr.mxu0 0.0
  %1276 = vmatpush1.msra.mxu0 0.0
  %1277 = vmatprep.subr.mxu0 0.0
  %1278 = vmatpush1.msra.mxu0 0.0
  %1279 = vmatprep.subr.mxu0 0.0
  %1280 = vmatpush1.msra.mxu0 0.0
  %1281 = vmatprep.subr.mxu0 0.0
  %1282 = vmatpush1.msra.mxu0 0.0
  %1283 = vmatprep.subr.mxu0 0.0
  %1284 = vmatpush1.msra.mxu0 0.0
  %1285 = vmatprep.subr.mxu0 0.0
  %1286 = vmatpush1.msra.mxu0 0.0
  %1287 = vmatprep.subr.mxu0 0.0
  %1288 = vmatpush1.msra.mxu0 0.0
  %1289 = vmatprep.subr.mxu0 0.0
  %1290 = vmatpush1.msra.mxu0 0.0
  %1291 = vmatprep.subr.mxu0 0.0
  %1292 = vmatpush1.msra.mxu0 0.0
  %1293 = vmatprep.subr.mxu0 0.0
  %1294 = vmatpush1.msra.mxu0 0.0
  %1295 = vmatprep.subr.mxu0 0.0
  %1296 = vmatpush1.msra.mxu0 0.0
  %1297 = vmatprep.mubr.f32.mxu0 0.0
  %v1298 = vand.u32 %v790, 4294901760
  %1299 = vmatmul.mubr.f32.gmra.mrb[0].mxu0 %v1298
  %v1300 = vpop.f32.mrb[0].mxu0
  %v1301 = vadd.f32 %v1194, %v1300
  %v1302 = vpop.f32.mrb[0].mxu0
  %1303 = vmatprep.mubr.f32.mxu0 0.0
  %v1304 = vand.u32 %v793, 4294901760
  %1305 = vmatmul.mubr.f32.gmra.mrb[0].mxu0 %v1304
  %v1306 = vpop.f32.mrb[0].mxu0
  %v1307 = vadd.f32 %v1202, %v1306
  %v1308 = vpop.f32.mrb[0].mxu0
  %1309 = vmatprep.mubr.f32.mxu0 0.0
  %v1310 = vand.u32 %v796, 4294901760
  %1311 = vmatmul.mubr.f32.gmra.mrb[0].mxu0 %v1310
  %v1312 = vpop.f32.mrb[0].mxu0
  %v1313 = vadd.f32 %v1210, %v1312
  %v1314 = vpop.f32.mrb[0].mxu0
  %1315 = vmatprep.mubr.f32.mxu0 0.0
  %v1316 = vand.u32 %v799, 4294901760
  %1317 = vmatmul.mubr.f32.gmra.mrb[0].mxu0 %v1316
  %v1318 = vpop.f32.mrb[0].mxu0
  %v1319 = vadd.f32 %v1218, %v1318
  %v1320 = vpop.f32.mrb[0].mxu0
  %1321 = vdwg.mxu0
  %1322 = vmatprep.subr.mxu0 0.0
  %v1323 = vand.u32 %v765, 4294901760
  %1324 = vmatpush1.msra.mxu0 %v1323
  %1325 = vmatprep.subr.mxu0 0.0
  %v1326 = vand.u32 %v766, 4294901760
  %1327 = vmatpush1.msra.mxu0 %v1326
  %1328 = vmatprep.subr.mxu0 0.0
  %v1329 = vand.u32 %v767, 4294901760
  %1330 = vmatpush1.msra.mxu0 %v1329
  %1331 = vmatprep.subr.mxu0 0.0
  %v1332 = vand.u32 %v768, 4294901760
  %1333 = vmatpush1.msra.mxu0 %v1332
  %1334 = vmatprep.subr.mxu0 0.0
  %1335 = vmatpush1.msra.mxu0 0.0
  %1336 = vmatprep.subr.mxu0 0.0
  %1337 = vmatpush1.msra.mxu0 0.0
  %1338 = vmatprep.subr.mxu0 0.0
  %1339 = vmatpush1.msra.mxu0 0.0
  %1340 = vmatprep.subr.mxu0 0.0
  %1341 = vmatpush1.msra.mxu0 0.0
  %1342 = vmatprep.subr.mxu0 0.0
  %1343 = vmatpush1.msra.mxu0 0.0
  %1344 = vmatprep.subr.mxu0 0.0
  %1345 = vmatpush1.msra.mxu0 0.0
  %1346 = vmatprep.subr.mxu0 0.0
  %1347 = vmatpush1.msra.mxu0 0.0
  %1348 = vmatprep.subr.mxu0 0.0
  %1349 = vmatpush1.msra.mxu0 0.0
  %1350 = vmatprep.subr.mxu0 0.0
  %1351 = vmatpush1.msra.mxu0 0.0
  %1352 = vmatprep.subr.mxu0 0.0
  %1353 = vmatpush1.msra.mxu0 0.0
  %1354 = vmatprep.subr.mxu0 0.0
  %1355 = vmatpush1.msra.mxu0 0.0
  %1356 = vmatprep.subr.mxu0 0.0
  %1357 = vmatpush1.msra.mxu0 0.0
  %1358 = vmatprep.subr.mxu0 0.0
  %1359 = vmatpush1.msra.mxu0 0.0
  %1360 = vmatprep.subr.mxu0 0.0
  %1361 = vmatpush1.msra.mxu0 0.0
  %1362 = vmatprep.subr.mxu0 0.0
  %1363 = vmatpush1.msra.mxu0 0.0
  %1364 = vmatprep.subr.mxu0 0.0
  %1365 = vmatpush1.msra.mxu0 0.0
  %1366 = vmatprep.subr.mxu0 0.0
  %1367 = vmatpush1.msra.mxu0 0.0
  %1368 = vmatprep.subr.mxu0 0.0
  %1369 = vmatpush1.msra.mxu0 0.0
  %1370 = vmatprep.subr.mxu0 0.0
  %1371 = vmatpush1.msra.mxu0 0.0
  %1372 = vmatprep.subr.mxu0 0.0
  %1373 = vmatpush1.msra.mxu0 0.0
  %1374 = vmatprep.subr.mxu0 0.0
  %1375 = vmatpush1.msra.mxu0 0.0
  %1376 = vmatprep.subr.mxu0 0.0
  %1377 = vmatpush1.msra.mxu0 0.0
  %1378 = vmatprep.subr.mxu0 0.0
  %1379 = vmatpush1.msra.mxu0 0.0
  %1380 = vmatprep.subr.mxu0 0.0
  %1381 = vmatpush1.msra.mxu0 0.0
  %1382 = vmatprep.subr.mxu0 0.0
  %1383 = vmatpush1.msra.mxu0 0.0
  %1384 = vmatprep.subr.mxu0 0.0
  %1385 = vmatpush1.msra.mxu0 0.0
  %1386 = vmatprep.subr.mxu0 0.0
  %1387 = vmatpush1.msra.mxu0 0.0
  %1388 = vmatprep.subr.mxu0 0.0
  %1389 = vmatpush1.msra.mxu0 0.0
  %1390 = vmatprep.mubr.f32.mxu0 0.0
  %v1391 = vand.u32 %v790, 4294901760
  %1392 = vmatmul.mubr.f32.gmra.mrb[0].mxu0 %v1391
  %v1393 = vpop.f32.mrb[0].mxu0
  %v1394 = vadd.f32 %v1301, %v1393
  %v1395 = vpop.f32.mrb[0].mxu0
  %1396 = vmatprep.mubr.f32.mxu0 0.0
  %v1397 = vand.u32 %v793, 4294901760
  %1398 = vmatmul.mubr.f32.gmra.mrb[0].mxu0 %v1397
  %v1399 = vpop.f32.mrb[0].mxu0
  %v1400 = vadd.f32 %v1307, %v1399
  %v1401 = vpop.f32.mrb[0].mxu0
  %1402 = vmatprep.mubr.f32.mxu0 0.0
  %v1403 = vand.u32 %v796, 4294901760
  %1404 = vmatmul.mubr.f32.gmra.mrb[0].mxu0 %v1403
  %v1405 = vpop.f32.mrb[0].mxu0
  %v1406 = vadd.f32 %v1313, %v1405
  %v1407 = vpop.f32.mrb[0].mxu0
  %1408 = vmatprep.mubr.f32.mxu0 0.0
  %v1409 = vand.u32 %v799, 4294901760
  %1410 = vmatmul.mubr.f32.gmra.mrb[0].mxu0 %v1409
  %v1411 = vpop.f32.mrb[0].mxu0
  %v1412 = vadd.f32 %v1319, %v1411
  %v1413 = vpop.f32.mrb[0].mxu0
  %1414 = vdwg.mxu0
  %v1415 = vmax.f32 %v1394, 0.0
  %v1416 = vmax.f32 %v1400, 0.0
  %v1417 = vmax.f32 %v1406, 0.0
  %v1418 = vmax.f32 %v1412, 0.0
  %1420 = vset.pattern.permute.xlu0 0
  %1421 = vperm.xlu0 %1420, %v54
  %v1422 = vpop.permute.xlu0 %1421
  %1425 = vset.pattern.permute.xlu0 0
  %1426 = vperm.xlu0 %1425, %v55
  %v1427 = vpop.permute.xlu0 %1426
  %1430 = vset.pattern.permute.xlu0 0
  %1431 = vperm.xlu0 %1430, %v56
  %v1432 = vpop.permute.xlu0 %1431
  %1435 = vset.pattern.permute.xlu0 0
  %1436 = vperm.xlu0 %1435, %v57
  %v1437 = vpop.permute.xlu0 %1436
  %v1439 = vmul.f32 %v1422, %v1415
  %v1440 = vmul.f32 %v1427, %v1416
  %v1441 = vmul.f32 %v1432, %v1417
  %v1442 = vmul.f32 %v1437, %v1418
  %v1443 = vadd.f32 %v1439, %v1440
  %v1444 = vadd.f32 %v1443, %v1441
  %v1445 = vadd.f32 %v1444, %v1442
  %v1446 = vrot.slane %v1445, 4
  %v1447 = vadd.f32 %v1445, %v1446
  %v1448 = vrot.slane %v1447, 2
  %v1449 = vadd.f32 %v1447, %v1448
  %v1450 = vrot.slane %v1449, 1
  %v1451 = vadd.f32 %v1449, %v1450
  %1453 = vset.pattern.permute.xlu0 0
  %1454 = vperm.xlu0 %1453, %v58
  %v1455 = vpop.permute.xlu0 %1454
  %v1457 = vlaneseq
  %v1458 = vshrl.u32 %v1457, 7
  %v1459 = vsub.s32 0, %v1458
  %v1460 = vrot.slane %v1455, %v1459
  %v1461 = vadd.f32 %v1451, %v1460
  %1462 = vst [vmem:[%s7] sm:$0x1] %v1461
  // Predicated region
  $region30: #{mlp_forward.1} parent=0 // pred_check
    _
  $region31: #{mlp_forward.1} parent=0 // pred_check_branch
    %1464 = sbr.rel (0) target = $region33
  $region32: #{mlp_forward.1} parent=0 // pred_region
    _
  $region33: #{mlp_forward.1} parent=0 // pred_fallthru
    _
  // Predicated region
  $region34: #{mlp_forward.1} parent=0 // pred_check
    _
  $region35: #{mlp_forward.1} parent=0 // pred_check_branch
    %1466 = sbr.rel (0) target = $region37
  $region36: #{mlp_forward.1} parent=0 // pred_region
    _
  $region37: #{mlp_forward.1} parent=0 // pred_fallthru
    _

</llo_original>
